<compile_context>
chip_gen: v7x
topology: tpu7x:2x2x1
jax: 0.10.0
libtpu: 0.0.40
codegen_flags: <defaults>
</compile_context>

<pallas_src>
import math

import jax
import jax.numpy as jnp
from jax.experimental import pallas as pl
from jax.experimental.pallas import tpu as pltpu


def _round_up(x, m):
    return ((x + m - 1) // m) * m


def dino_classifier_kernel(x_ref, w1_ref, b1_ref, w2_ref, b2_ref, o_ref):
    # Hidden layer on the MXU: x arrives f32 straight from HBM and is cast to
    # bf16 here (VPU work, hidden under the tile DMA); W1 is already bf16.
    # Accumulation and all post-matmul math stay f32 (safe on v5e too).
    x_bf = x_ref[...].astype(jnp.bfloat16)
    h = jnp.dot(x_bf, w1_ref[...], preferred_element_type=jnp.float32)
    h = jnp.maximum(h + b1_ref[...], 0.0)          # bias + ReLU in f32 (VPU)

    # Output layer: N=1 matmul replaced by VPU multiply + XLU lane reduction.
    # w2_ref is a lane-dense (1, H) row; b2 is an SMEM scalar.
    logit = jnp.sum(h * w2_ref[...], axis=-1, keepdims=True) + b2_ref[0, 0]

    # Sigmoid epilogue on the EUP (exp + exact reciprocal; both are free in
    # this memory-bound regime).
    prob = pl.reciprocal(1.0 + jnp.exp(-logit), approx=False)
    o_ref[...] = prob.astype(o_ref.dtype)


def dino_classifier(x, w1, b1, w2, b2, *, tile_b=1024):
    """x: [B, D] float32 -> [B, 1] float32 (sigmoid probabilities).

    Weights follow the transposed-vs-PyTorch layout: w1 [D, H], b1 [1, H],
    w2 [H, 1] (or [1, H]), b2 [1, 1].
    """
    B, D = x.shape
    H = w1.shape[1]

    # Batch tile: multiple of 128 (full MXU rows), big enough to amortize the
    # ~0.35 us/step grid overhead, capped so (a) the grid keeps >= 2 steps
    # when possible (v7x megacore) and (b) the f32 x double-buffer stays well
    # inside VMEM even at the 4096 clamp (~24 MiB).
    tile_b = _round_up(max(128, min(int(tile_b), 4096)), 128)
    if B > 128:
        tile_b = min(tile_b, _round_up(pl.cdiv(B, 2), 128))
    grid = (pl.cdiv(B, tile_b),)   # ragged last tile is handled by Pallas

    # Weights are tiny and VMEM-resident across the whole grid; bf16 W1 feeds
    # the MXU directly.  x is passed through untouched (no wrapper-side cast,
    # no jnp.pad copy).
    w1_bf = w1.astype(jnp.bfloat16)
    b1_row = b1.reshape(1, H).astype(jnp.float32)
    w2_row = w2.reshape(1, H).astype(jnp.float32)   # lane-dense row
    b2_sc = b2.reshape(1, 1).astype(jnp.float32)    # SMEM scalar

    cost = pl.CostEstimate(
        flops=2 * B * D * H + 4 * B * H,
        transcendentals=2 * B,
        bytes_accessed=(B * D * 4            # x stream (f32, native dtype)
                        + D * H * 2          # W1 bf16 (fetched once)
                        + 2 * H * 4 + 4      # b1, W2 row, b2
                        + B * 4),            # output
    )

    out = pl.pallas_call(
        dino_classifier_kernel,
        out_shape=jax.ShapeDtypeStruct((B, 1), jnp.float32),
        grid=grid,
        in_specs=[
            pl.BlockSpec((tile_b, D), lambda i: (i, 0)),   # x tile (streamed)
            pl.BlockSpec((D, H), lambda i: (0, 0)),        # W1 (resident)
            pl.BlockSpec((1, H), lambda i: (0, 0)),        # b1 (resident)
            pl.BlockSpec((1, H), lambda i: (0, 0)),        # W2 row (resident)
            pl.BlockSpec(memory_space=pltpu.MemorySpace.SMEM),  # b2 scalar
        ],
        out_specs=pl.BlockSpec((tile_b, 1), lambda i: (i, 0)),
        compiler_params=pltpu.CompilerParams(
            dimension_semantics=("parallel",),
            vmem_limit_bytes=48 * 1024 * 1024,
        ),
        cost_estimate=cost,
    )(x, w1_bf, b1_row, w2_row, b2_sc)

    return out


def init_params(key, embedding_dim=768, hidden=256):
    """Deterministic init mimicking PyTorch nn.Linear (uniform +- 1/sqrt(fan_in))."""
    k1, k2, k3, k4 = jax.random.split(key, 4)
    bound1 = 1.0 / math.sqrt(embedding_dim)
    bound2 = 1.0 / math.sqrt(hidden)
    w1 = jax.random.uniform(k1, (embedding_dim, hidden), jnp.float32, -bound1, bound1)
    b1 = jax.random.uniform(k2, (1, hidden), jnp.float32, -bound1, bound1)
    w2 = jax.random.uniform(k3, (hidden, 1), jnp.float32, -bound2, bound2)
    b2 = jax.random.uniform(k4, (1, 1), jnp.float32, -bound2, bound2)
    return w1, b1, w2, b2


if __name__ == "__main__":
    key = jax.random.PRNGKey(0)
    k_x, k_p = jax.random.split(key)

    # Module-implied sizes: embedding_dim=768, hidden=256.  B=300 is
    # deliberately NOT a multiple of the tile so the ragged-last-tile path
    # (no jnp.pad) and a multi-step batch grid are both exercised.
    B, D, H = 300, 768, 256
    x = jax.random.normal(k_x, (B, D), jnp.float32)
    w1, b1, w2, b2 = init_params(k_p, embedding_dim=D, hidden=H)

    out = dino_classifier(x, w1, b1, w2, b2, tile_b=128)
    out = jax.block_until_ready(out)

    # Pure-JAX f32 reference (kernel uses bf16 MXU operands -> loosened atol).
    ref = jax.nn.sigmoid(jnp.maximum(x @ w1 + b1, 0.0) @ w2 + b2)
    assert out.shape == (B, 1)
    assert jnp.allclose(out, ref, atol=2e-2), float(jnp.max(jnp.abs(out - ref)))

    print("KERNEL_OK")
</pallas_src>

<mosaic_0001>
module attributes {stable_mosaic.version = 11 : i64} {
  func.func @dino_classifier_kernel(%arg0: i32, %arg1: memref<128x768xf32, #tpu.memory_space<vmem>>, %arg2: memref<768x256xbf16, #tpu.memory_space<vmem>>, %arg3: memref<1x256xf32, #tpu.memory_space<vmem>>, %arg4: memref<1x256xf32, #tpu.memory_space<vmem>>, %arg5: memref<1x1xf32, #tpu.memory_space<smem>>, %arg6: memref<128x1xf32, #tpu.memory_space<vmem>>) attributes {dimension_semantics = [#tpu.dimension_semantics<parallel>], iteration_bounds = array<i64: 3>, scalar_prefetch = 0 : i64, scratch_operands = 0 : i64, tpu.core_type = #tpu.core_type<tc>, window_params = [{transform_indices = @transform_0, window_bounds = array<i64: 128, 768>}, {pipeline_mode = #tpu.pipeline_mode<synchronous>, transform_indices = @transform_1, window_bounds = array<i64: 768, 256>}, {pipeline_mode = #tpu.pipeline_mode<synchronous>, transform_indices = @transform_2, window_bounds = array<i64: 1, 256>}, {pipeline_mode = #tpu.pipeline_mode<synchronous>, transform_indices = @transform_3, window_bounds = array<i64: 1, 256>}, {transform_indices = @transform_4, window_bounds = array<i64: 1, 1>}, {transform_indices = @transform_5, window_bounds = array<i64: 128, 1>}]} {
    %c0 = arith.constant 0 : index
    %c0_0 = arith.constant 0 : index
    %0 = vector.load %arg1[%c0, %c0_0] : memref<128x768xf32, #tpu.memory_space<vmem>>, vector<128x768xf32>
    %1 = arith.truncf %0 : vector<128x768xf32> to vector<128x768xbf16>
    %c0_1 = arith.constant 0 : index
    %c0_2 = arith.constant 0 : index
    %2 = vector.load %arg2[%c0_1, %c0_2] : memref<768x256xbf16, #tpu.memory_space<vmem>>, vector<768x256xbf16>
    %cst = arith.constant dense<0.000000e+00> : vector<128x256xf32>
    %3 = tpu.matmul %1, %2, %cst {dimension_numbers = #tpu.dot_dimension_numbers<[1], [0], [0], [1], [0, 0, 1, 1], [], []>} : vector<128x768xbf16>, vector<768x256xbf16>, vector<128x256xf32> -> vector<128x256xf32>
    %c0_3 = arith.constant 0 : index
    %c0_4 = arith.constant 0 : index
    %4 = vector.load %arg3[%c0_3, %c0_4] : memref<1x256xf32, #tpu.memory_space<vmem>>, vector<1x256xf32>
    %5 = vector.broadcast %4 : vector<1x256xf32> to vector<128x256xf32>
    %6 = arith.addf %3, %5 : vector<128x256xf32>
    %cst_5 = arith.constant 0.000000e+00 : f32
    %7 = vector.broadcast %cst_5 : f32 to vector<128x256xf32>
    %8 = arith.maximumf %6, %7 : vector<128x256xf32>
    %c0_6 = arith.constant 0 : index
    %c0_7 = arith.constant 0 : index
    %9 = vector.load %arg4[%c0_6, %c0_7] : memref<1x256xf32, #tpu.memory_space<vmem>>, vector<1x256xf32>
    %10 = vector.broadcast %9 : vector<1x256xf32> to vector<128x256xf32>
    %11 = arith.mulf %8, %10 : vector<128x256xf32>
    %cst_8 = arith.constant dense<0.000000e+00> : vector<128xf32>
    %12 = vector.multi_reduction <add>, %11, %cst_8 [1] : vector<128x256xf32> to vector<128xf32>
    %13 = vector.shape_cast %12 : vector<128xf32> to vector<128x1xf32>
    %c0_9 = arith.constant 0 : index
    %c0_10 = arith.constant 0 : index
    %14 = memref.load %arg5[%c0_9, %c0_10] : memref<1x1xf32, #tpu.memory_space<smem>>
    %15 = vector.broadcast %14 : f32 to vector<128x1xf32>
    %16 = arith.addf %13, %15 : vector<128x1xf32>
    %cst_11 = arith.constant 0.000000e+00 : f32
    %17 = vector.broadcast %cst_11 : f32 to vector<128x1xf32>
    %18 = arith.subf %17, %16 : vector<128x1xf32>
    %19 = math.exp %18 : vector<128x1xf32>
    %cst_12 = arith.constant 1.000000e+00 : f32
    %20 = vector.broadcast %cst_12 : f32 to vector<128x1xf32>
    %21 = arith.addf %20, %19 : vector<128x1xf32>
    %22 = tpu.reciprocal %21 : vector<128x1xf32> -> vector<128x1xf32>
    %c0_13 = arith.constant 0 : index
    %c0_14 = arith.constant 0 : index
    %23 = vector.load %arg6[%c0_13, %c0_14] : memref<128x1xf32, #tpu.memory_space<vmem>>, vector<128x1xf32>
    tpu.vector_store %arg6[%c0_13, %c0_14], %22 {strides = array<i32>} : memref<128x1xf32, #tpu.memory_space<vmem>>, vector<128x1xf32>,
    return
  }
  func.func @transform_0(%arg0: i32) -> (i32, i32) {
    %c0_i32 = arith.constant 0 : i32
    %c0_i32_0 = arith.constant 0 : i32
    return %arg0, %c0_i32 : i32, i32
  }
  func.func @transform_1(%arg0: i32) -> (i32, i32) {
    %c0_i32 = arith.constant 0 : i32
    %c0_i32_0 = arith.constant 0 : i32
    %c0_i32_1 = arith.constant 0 : i32
    return %c0_i32, %c0_i32_0 : i32, i32
  }
  func.func @transform_2(%arg0: i32) -> (i32, i32) {
    %c0_i32 = arith.constant 0 : i32
    %c0_i32_0 = arith.constant 0 : i32
    %c0_i32_1 = arith.constant 0 : i32
    return %c0_i32, %c0_i32_0 : i32, i32
  }
  func.func @transform_3(%arg0: i32) -> (i32, i32) {
    %c0_i32 = arith.constant 0 : i32
    %c0_i32_0 = arith.constant 0 : i32
    %c0_i32_1 = arith.constant 0 : i32
    return %c0_i32, %c0_i32_0 : i32, i32
  }
  func.func @transform_4(%arg0: i32) -> (i32, i32) {
    %c0_i32 = arith.constant 0 : i32
    %c0_i32_0 = arith.constant 0 : i32
    %c0_i32_1 = arith.constant 0 : i32
    return %c0_i32, %c0_i32_0 : i32, i32
  }
  func.func @transform_5(%arg0: i32) -> (i32, i32) {
    %c0_i32 = arith.constant 0 : i32
    %c0_i32_0 = arith.constant 0 : i32
    return %arg0, %c0_i32 : i32, i32
  }
}

</mosaic_0001>

<llo_original>
// kernel: tpu_custom_call.1
$region0: #{tpu_custom_call.1}
  #allocation0 [shape = 'u32[]', space=smem, size = 0x4, offset = 0x4, fixed_abs, tag = 'smem constant byte address 0x4 - core index']
  #allocation1 [shape = 'u32[144,128]{1,0:T(1,128)}', space=vmem, size = 0x12000, scoped, tag = 'internal scratch']
  #allocation2 [shape = 'f32[1,1]{1,0:T(1,128)S(6)}', space=smem, size = 0x200, scoped, tag = 'scoped memory for tpu_custom_call.1']
  %s0 = inlined_call_operand.hbm [shape: f32[300,768], index: 0, kind: input, shape index: {}]
  %s1 = inlined_call_operand.hbm [shape: bf16[768,256], index: 1, kind: input, shape index: {}]
  %s2 = inlined_call_operand.vmem [shape: f32[1,256], index: 2, kind: input, shape index: {}]
  %s3 = inlined_call_operand.vmem [shape: f32[1,256], index: 3, kind: input, shape index: {}]
  %s4 = inlined_call_operand.<no memory space> [shape: f32[1,1], index: 4, kind: input, shape index: {}]
  %s5 = inlined_call_operand.vmem [shape: f32[300,1], index: 5, kind: output, shape index: {}]
  %s6 = sld [smem:[#allocation0]]
  $region109: #{tpu_custom_call.1} parent=0
    _
  %s8 = ssub.s32 1, %s6
  %s9 = scalar_select 0, %s8, %s6
  %10 = sst [smem:[#allocation2]] %s4
  $region1: #{tpu_custom_call.1} parent=0
    #allocation3 [shape = 'u8[786432]{0}', space=vmem, size = 0xc0000, scoped, tag = 'input window, operand 0']
    #allocation4 [shape = 's32[2]{0}', space=sflag, size = 0x8, scoped, tag = 'scoped memory for tpu_custom_call.1']
    #allocation5 [shape = 'u8[393216]{0}', space=vmem, size = 0x60000, scoped, tag = 'input window, operand 1, single buffered']
    #allocation6 [shape = 's32[1]{0}', space=sflag, size = 0x4, scoped, tag = 'scoped memory for tpu_custom_call.1']
    #allocation7 [shape = 'u8[131072]{0}', space=vmem, size = 0x20000, scoped, tag = 'output window, operand 0']
    %11 = vsyncpa [#allocation4], 0
    %s12 = scalar_lea.sflag [#allocation4], 1
    %13 = vsyncpa %s12, 0
    %14 = vsyncpa [#allocation6], 0
    loop: start=0, step=1, limit=5
    $region2: #{tpu_custom_call.1} parent=1 // loop_pre_header
      _
    $region3: #{tpu_custom_call.1} parent=1 // loop_header
      %s16 = sphi 0, %s20
      %p17 = scmp.ge.s32.totalorder %s16, 5
      %s26 = sphi 0, %s28
      %s29 = sphi 0, %s26
      %s30 = sphi 0, %s29
      %s46 = sphi 0, %s30
      %s50 = sphi 0, %s50
      %s52 = sphi 0, %s50
      %s53 = sphi 0, %s52
      %s67 = sphi 0, %s53
      %s71 = sphi 0, %s71
      %s73 = sphi 0, %s71
      %s74 = sphi 0, %s73
      %s88 = sphi 0, %s74
      %s92 = sphi 0, %s92
      %s94 = sphi 0, %s92
      %s95 = sphi 0, %s94
      %s109 = sphi 0, %s95
      %s113 = sphi 0, %s113
      %s115 = sphi 0, %s113
      %s116 = sphi 0, %s115
      %s130 = sphi 0, %s116
      %s136 = sphi 0, %s138
      %s139 = sphi 0, %s136
      %s140 = sphi 0, %s139
      %s156 = sphi 0, %s140
    $region4: #{tpu_custom_call.1} parent=1 // loop_header_branch
      %19 = sbr.rel (%p17) target = $region8
    $region5: #{tpu_custom_call.1} parent=1 // loop_body
      %s21 = ssub.s32 %s16, 1
      %s22 = ssub.s32 %s16, 2
      %s23 = sadd.s32 %s16, 1
      %s24 = ssub.s32 %s16, %s23
      %p25 = scmp.eq.s32.totalorder %s24, 0
      %s27 = sadd.s32 %s26, 1
      %s28 = scalar_select %p25, %s26, %s27
      %p31 = pneg %p25
      %p32 = scmp.eq.s32.totalorder %s16, 2
      %p33 = por %p31, %p32
      %p34 = scmp.ne.s32.totalorder %s26, %s29
      %p35 = scmp.eq.s32.totalorder %s16, 0
      %p36 = por %p34, %p35
      %p37 = scmp.ne.s32.totalorder %s26, %s29
      %p38 = scmp.eq.s32.totalorder %s21, 2
      %p39 = por %p37, %p38
      %p40 = scmp.ne.s32.totalorder %s29, %s30
      %p41 = scmp.eq.s32.totalorder %s21, 0
      %p42 = por %p40, %p41
      %p43 = scmp.ne.s32.totalorder %s29, %s30
      %p44 = scmp.eq.s32.totalorder %s22, 2
      %p45 = por %p43, %p44
      %p47 = scmp.ne.s32.totalorder %s30, %s46
      %p48 = scmp.eq.s32.totalorder %s22, 0
      %p49 = por %p47, %p48
      %s51 = sadd.s32 %s50, 1
      %p54 = scmp.eq.s32.totalorder %s16, 2
      %p55 = scmp.ne.s32.totalorder %s50, %s52
      %p56 = scmp.eq.s32.totalorder %s16, 0
      %p57 = por %p55, %p56
      %p58 = scmp.ne.s32.totalorder %s50, %s52
      %p59 = scmp.eq.s32.totalorder %s21, 2
      %p60 = por %p58, %p59
      %p61 = scmp.ne.s32.totalorder %s52, %s53
      %p62 = scmp.eq.s32.totalorder %s21, 0
      %p63 = por %p61, %p62
      %p64 = scmp.ne.s32.totalorder %s52, %s53
      %p65 = scmp.eq.s32.totalorder %s22, 2
      %p66 = por %p64, %p65
      %p68 = scmp.ne.s32.totalorder %s53, %s67
      %p69 = scmp.eq.s32.totalorder %s22, 0
      %p70 = por %p68, %p69
      %s72 = sadd.s32 %s71, 1
      %p75 = scmp.eq.s32.totalorder %s16, 2
      %p76 = scmp.ne.s32.totalorder %s71, %s73
      %p77 = scmp.eq.s32.totalorder %s16, 0
      %p78 = por %p76, %p77
      %p79 = scmp.ne.s32.totalorder %s71, %s73
      %p80 = scmp.eq.s32.totalorder %s21, 2
      %p81 = por %p79, %p80
      %p82 = scmp.ne.s32.totalorder %s73, %s74
      %p83 = scmp.eq.s32.totalorder %s21, 0
      %p84 = por %p82, %p83
      %p85 = scmp.ne.s32.totalorder %s73, %s74
      %p86 = scmp.eq.s32.totalorder %s22, 2
      %p87 = por %p85, %p86
      %p89 = scmp.ne.s32.totalorder %s74, %s88
      %p90 = scmp.eq.s32.totalorder %s22, 0
      %p91 = por %p89, %p90
      %s93 = sadd.s32 %s92, 1
      %p96 = scmp.eq.s32.totalorder %s16, 2
      %p97 = scmp.ne.s32.totalorder %s92, %s94
      %p98 = scmp.eq.s32.totalorder %s16, 0
      %p99 = por %p97, %p98
      %p100 = scmp.ne.s32.totalorder %s92, %s94
      %p101 = scmp.eq.s32.totalorder %s21, 2
      %p102 = por %p100, %p101
      %p103 = scmp.ne.s32.totalorder %s94, %s95
      %p104 = scmp.eq.s32.totalorder %s21, 0
      %p105 = por %p103, %p104
      %p106 = scmp.ne.s32.totalorder %s94, %s95
      %p107 = scmp.eq.s32.totalorder %s22, 2
      %p108 = por %p106, %p107
      %p110 = scmp.ne.s32.totalorder %s95, %s109
      %p111 = scmp.eq.s32.totalorder %s22, 0
      %p112 = por %p110, %p111
      %s114 = sadd.s32 %s113, 1
      %p117 = scmp.eq.s32.totalorder %s16, 2
      %p118 = scmp.ne.s32.totalorder %s113, %s115
      %p119 = scmp.eq.s32.totalorder %s16, 0
      %p120 = por %p118, %p119
      %p121 = scmp.ne.s32.totalorder %s113, %s115
      %p122 = scmp.eq.s32.totalorder %s21, 2
      %p123 = por %p121, %p122
      %p124 = scmp.ne.s32.totalorder %s115, %s116
      %p125 = scmp.eq.s32.totalorder %s21, 0
      %p126 = por %p124, %p125
      %p127 = scmp.ne.s32.totalorder %s115, %s116
      %p128 = scmp.eq.s32.totalorder %s22, 2
      %p129 = por %p127, %p128
      %p131 = scmp.ne.s32.totalorder %s116, %s130
      %p132 = scmp.eq.s32.totalorder %s22, 0
      %p133 = por %p131, %p132
      %s134 = ssub.s32 %s16, %s23
      %p135 = scmp.eq.s32.totalorder %s134, 0
      %s137 = sadd.s32 %s136, 1
      %s138 = scalar_select %p135, %s136, %s137
      %p141 = pneg %p135
      %p142 = scmp.eq.s32.totalorder %s16, 2
      %p143 = por %p141, %p142
      %p144 = scmp.ne.s32.totalorder %s136, %s139
      %p145 = scmp.eq.s32.totalorder %s16, 0
      %p146 = por %p144, %p145
      %p147 = scmp.ne.s32.totalorder %s136, %s139
      %p148 = scmp.eq.s32.totalorder %s21, 2
      %p149 = por %p147, %p148
      %p150 = scmp.ne.s32.totalorder %s139, %s140
      %p151 = scmp.eq.s32.totalorder %s21, 0
      %p152 = por %p150, %p151
      %p153 = scmp.ne.s32.totalorder %s139, %s140
      %p154 = scmp.eq.s32.totalorder %s22, 2
      %p155 = por %p153, %p154
      %p157 = scmp.ne.s32.totalorder %s140, %s156
      %p158 = scmp.eq.s32.totalorder %s22, 0
      %p159 = por %p157, %p158
      %p160 = scmp.le.s32.totalorder 1, %s16
      %p161 = scmp.lt.s32.totalorder %s16, 4
      %p162 = pnand %p160, %p161
      %p163 = pneg %p162
      // Predicated region
      $region9: #{tpu_custom_call.1} parent=5 // pred_check
        _
      $region10: #{tpu_custom_call.1} parent=5 // pred_check_branch
        %165 = sbr.rel (%p162) target = $region12
      $region11: #{tpu_custom_call.1} parent=5 // pred_region
        %s166 = ssub.s32 %s16, 1
        // Predicated region
        $region13: #{tpu_custom_call.1} parent=11 // pred_check
          %p167 = pneg %p63
        $region14: #{tpu_custom_call.1} parent=11 // pred_check_branch
          %169 = sbr.rel (%p167) target = $region16
        $region15: #{tpu_custom_call.1} parent=11 // pred_region
          %s171 = ssub.s32 12288, 12288
          %172 = vsyncadd [#allocation6], %s171
          %s173 = sshll.u32 [#allocation5], 4
          %s174 = int_to_ptr.vmem [resolvable:$true] %s173
          %179 = dma.hbm_to_vmem [thread:$0]  %s1, 12288, %s174, [#allocation6], 128, 128, 8
        $region16: #{tpu_custom_call.1} parent=11 // pred_fallthru
          _
        // Predicated region
        $region17: #{tpu_custom_call.1} parent=11 // pred_check
          %p180 = pneg %p84
        $region18: #{tpu_custom_call.1} parent=11 // pred_check_branch
          %182 = sbr.rel (%p180) target = $region20
        $region19: #{tpu_custom_call.1} parent=11 // pred_region
          _
        $region20: #{tpu_custom_call.1} parent=11 // pred_fallthru
          _
        // Predicated region
        $region21: #{tpu_custom_call.1} parent=11 // pred_check
          %p183 = pneg %p105
        $region22: #{tpu_custom_call.1} parent=11 // pred_check_branch
          %185 = sbr.rel (%p183) target = $region24
        $region23: #{tpu_custom_call.1} parent=11 // pred_region
          _
        $region24: #{tpu_custom_call.1} parent=11 // pred_fallthru
          _
        // Predicated region
        $region25: #{tpu_custom_call.1} parent=11 // pred_check
          %p186 = pneg %p126
        $region26: #{tpu_custom_call.1} parent=11 // pred_check_branch
          %188 = sbr.rel (%p186) target = $region28
        $region27: #{tpu_custom_call.1} parent=11 // pred_region
          _
        $region28: #{tpu_custom_call.1} parent=11 // pred_fallthru
          _
      $region12: #{tpu_custom_call.1} parent=5 // pred_fallthru
        _
      %p189 = scmp.lt.s32.totalorder %s16, 3
      // Predicated region
      $region29: #{tpu_custom_call.1} parent=5 // pred_check
        %p190 = pneg %p189
      $region30: #{tpu_custom_call.1} parent=5 // pred_check_branch
        %192 = sbr.rel (%p190) target = $region32
      $region31: #{tpu_custom_call.1} parent=5 // pred_region
        // Predicated region
        $region33: #{tpu_custom_call.1} parent=31 // pred_check
          %p193 = pneg %p36
        $region34: #{tpu_custom_call.1} parent=31 // pred_check_branch
          %195 = sbr.rel (%p193) target = $region36
        $region35: #{tpu_custom_call.1} parent=31 // pred_region
          %s196 = sand.u32 %s26, 1
          %s197 = scalar_lea.sflag [#allocation4], %s196
          %s198 = sand.u32 %s26, 1
          %s199 = smul.addr %s198, 768
          %s200 = scalar_lea.vmem [#allocation3], %s199
          %s201 = smul.u32 16, %s16
          %s202 = ssub.s32 38, %s201
          %p203 = scmp.lt.s32.totalorder %s202, 16
          %s204 = scalar_select %p203, %s202, 16
          %s205 = smul.u32 128, %s204
          %s206 = smul.u32 %s205, 6
          %s208 = ssub.s32 12288, %s206
          %209 = vsyncadd %s197, %s208
          %p210 = scmp.ne.s32.totalorder 0, %s206
          %s211 = smul.addr %s201, 6
          %s212 = smul.addr %s211, 128
          %s213 = scalar_lea.hbm %s0, %s212
          %s214 = smul.u32 48, %s204
          %s215 = sshll.u32 %s200, 4
          %s216 = int_to_ptr.vmem [resolvable:$true] %s215
          %s217 = sshll.u32 %s214, 4
          %221 = dma.hbm_to_vmem [thread:$0]  (%p210), %s213, %s217, %s216, %s197, 768, 768, 48
        $region36: #{tpu_custom_call.1} parent=31 // pred_fallthru
          _
      $region32: #{tpu_custom_call.1} parent=5 // pred_fallthru
        _
      %p222 = scmp.le.s32.totalorder 1, %s16
      %p223 = scmp.lt.s32.totalorder %s16, 4
      %p224 = pnand %p222, %p223
      %p225 = pneg %p224
      // Predicated region
      $region37: #{tpu_custom_call.1} parent=5 // pred_check
        _
      $region38: #{tpu_custom_call.1} parent=5 // pred_check_branch
        %227 = sbr.rel (%p224) target = $region40
      $region39: #{tpu_custom_call.1} parent=5 // pred_region
        %s228 = ssub.s32 %s16, 1
        %s229 = sand.u32 %s29, 1
        %s230 = scalar_lea.sflag [#allocation4], %s229
        %s231 = sand.u32 %s29, 1
        %s232 = smul.addr %s231, 768
        %s233 = scalar_lea.vmem [#allocation3], %s232
        // Predicated region
        $region41: #{tpu_custom_call.1} parent=39 // pred_check
          %p234 = pneg %p42
        $region42: #{tpu_custom_call.1} parent=39 // pred_check_branch
          %236 = sbr.rel (%p234) target = $region44
        $region43: #{tpu_custom_call.1} parent=39 // pred_region
          %237 = dma.done %s230, 12288
        $region44: #{tpu_custom_call.1} parent=39 // pred_fallthru
          _
        // Predicated region
        $region45: #{tpu_custom_call.1} parent=39 // pred_check
          %p238 = pneg %p63
        $region46: #{tpu_custom_call.1} parent=39 // pred_check_branch
          %240 = sbr.rel (%p238) target = $region48
        $region47: #{tpu_custom_call.1} parent=39 // pred_region
          %241 = dma.done [#allocation6], 12288
        $region48: #{tpu_custom_call.1} parent=39 // pred_fallthru
          _
        %s242 = sand.u32 %s29, 1
        %s243 = scalar_lea.sflag [#allocation4], %s242
        %s244 = sand.u32 %s29, 1
        %s245 = smul.addr %s244, 768
        %s246 = scalar_lea.vmem [#allocation3], %s245
        %p247 = pneg %p42
        %p248 = pneg %p39
        %p249 = pneg %p63
        %p250 = pneg %p60
        %p251 = pneg %p84
        %p252 = pneg %p81
        %p253 = pneg %p105
        %p254 = pneg %p102
        %p255 = pneg %p126
        %p256 = pneg %p123
        %p257 = pneg %p152
        %p258 = pneg %p149
        %s259 = sand.u32 %s139, 1
        %s260 = sand.u32 %s139, 1
        %s261 = smul.addr %s260, 128
        %s262 = scalar_lea.vmem [#allocation7], %s261
        %s263 = smul.u32 16, %s21
        %s264 = ssub.s32 38, %s263
        %p265 = scmp.lt.s32.totalorder %s264, 16
        %s266 = scalar_select %p265, %s264, 16
        %s267 = smul.u32 128, %s266
        %s268 = smul.u32 %s267, 6
        %s269 = smul.u32 16, %s21
        %s270 = ssub.s32 38, %s269
        %p271 = scmp.lt.s32.totalorder %s270, 16
        %s272 = scalar_select %p271, %s270, 16
        %s273 = smul.u32 128, %s272
        %v274 = vld [vmem:[%s233] sm:$0xff]
        %v275 = vld [vmem:[%s233 + $0x8] sm:$0xff]
        %v276 = vld [vmem:[%s233 + $0x10] sm:$0xff]
        %v277 = vld [vmem:[%s233 + $0x18] sm:$0xff]
        %v278 = vld [vmem:[%s233 + $0x20] sm:$0xff]
        %v279 = vld [vmem:[%s233 + $0x28] sm:$0xff]
        %v280 = vld [vmem:[%s233 + $0x30] sm:$0xff]
        %v281 = vld [vmem:[%s233 + $0x38] sm:$0xff]
        %v282 = vld [vmem:[%s233 + $0x40] sm:$0xff]
        %v283 = vld [vmem:[%s233 + $0x48] sm:$0xff]
        %v284 = vld [vmem:[%s233 + $0x50] sm:$0xff]
        %v285 = vld [vmem:[%s233 + $0x58] sm:$0xff]
        %v286 = vld [vmem:[%s233 + $0x60] sm:$0xff]
        %v287 = vld [vmem:[%s233 + $0x68] sm:$0xff]
        %v288 = vld [vmem:[%s233 + $0x70] sm:$0xff]
        %v289 = vld [vmem:[%s233 + $0x78] sm:$0xff]
        %v290 = vld [vmem:[%s233 + $0x80] sm:$0xff]
        %v291 = vld [vmem:[%s233 + $0x88] sm:$0xff]
        %v292 = vld [vmem:[%s233 + $0x90] sm:$0xff]
        %v293 = vld [vmem:[%s233 + $0x98] sm:$0xff]
        %v294 = vld [vmem:[%s233 + $0xa0] sm:$0xff]
        %v295 = vld [vmem:[%s233 + $0xa8] sm:$0xff]
        %v296 = vld [vmem:[%s233 + $0xb0] sm:$0xff]
        %v297 = vld [vmem:[%s233 + $0xb8] sm:$0xff]
        %v298 = vld [vmem:[%s233 + $0xc0] sm:$0xff]
        %v299 = vld [vmem:[%s233 + $0xc8] sm:$0xff]
        %v300 = vld [vmem:[%s233 + $0xd0] sm:$0xff]
        %v301 = vld [vmem:[%s233 + $0xd8] sm:$0xff]
        %v302 = vld [vmem:[%s233 + $0xe0] sm:$0xff]
        %v303 = vld [vmem:[%s233 + $0xe8] sm:$0xff]
        %v304 = vld [vmem:[%s233 + $0xf0] sm:$0xff]
        %v305 = vld [vmem:[%s233 + $0xf8] sm:$0xff]
        %v306 = vld [vmem:[%s233 + $0x100] sm:$0xff]
        %v307 = vld [vmem:[%s233 + $0x108] sm:$0xff]
        %v308 = vld [vmem:[%s233 + $0x110] sm:$0xff]
        %v309 = vld [vmem:[%s233 + $0x118] sm:$0xff]
        %v310 = vld [vmem:[%s233 + $0x120] sm:$0xff]
        %v311 = vld [vmem:[%s233 + $0x128] sm:$0xff]
        %v312 = vld [vmem:[%s233 + $0x130] sm:$0xff]
        %v313 = vld [vmem:[%s233 + $0x138] sm:$0xff]
        %v314 = vld [vmem:[%s233 + $0x140] sm:$0xff]
        %v315 = vld [vmem:[%s233 + $0x148] sm:$0xff]
        %v316 = vld [vmem:[%s233 + $0x150] sm:$0xff]
        %v317 = vld [vmem:[%s233 + $0x158] sm:$0xff]
        %v318 = vld [vmem:[%s233 + $0x160] sm:$0xff]
        %v319 = vld [vmem:[%s233 + $0x168] sm:$0xff]
        %v320 = vld [vmem:[%s233 + $0x170] sm:$0xff]
        %v321 = vld [vmem:[%s233 + $0x178] sm:$0xff]
        %v322 = vld [vmem:[%s233 + $0x180] sm:$0xff]
        %v323 = vld [vmem:[%s233 + $0x188] sm:$0xff]
        %v324 = vld [vmem:[%s233 + $0x190] sm:$0xff]
        %v325 = vld [vmem:[%s233 + $0x198] sm:$0xff]
        %v326 = vld [vmem:[%s233 + $0x1a0] sm:$0xff]
        %v327 = vld [vmem:[%s233 + $0x1a8] sm:$0xff]
        %v328 = vld [vmem:[%s233 + $0x1b0] sm:$0xff]
        %v329 = vld [vmem:[%s233 + $0x1b8] sm:$0xff]
        %v330 = vld [vmem:[%s233 + $0x1c0] sm:$0xff]
        %v331 = vld [vmem:[%s233 + $0x1c8] sm:$0xff]
        %v332 = vld [vmem:[%s233 + $0x1d0] sm:$0xff]
        %v333 = vld [vmem:[%s233 + $0x1d8] sm:$0xff]
        %v334 = vld [vmem:[%s233 + $0x1e0] sm:$0xff]
        %v335 = vld [vmem:[%s233 + $0x1e8] sm:$0xff]
        %v336 = vld [vmem:[%s233 + $0x1f0] sm:$0xff]
        %v337 = vld [vmem:[%s233 + $0x1f8] sm:$0xff]
        %v338 = vld [vmem:[%s233 + $0x200] sm:$0xff]
        %v339 = vld [vmem:[%s233 + $0x208] sm:$0xff]
        %v340 = vld [vmem:[%s233 + $0x210] sm:$0xff]
        %v341 = vld [vmem:[%s233 + $0x218] sm:$0xff]
        %v342 = vld [vmem:[%s233 + $0x220] sm:$0xff]
        %v343 = vld [vmem:[%s233 + $0x228] sm:$0xff]
        %v344 = vld [vmem:[%s233 + $0x230] sm:$0xff]
        %v345 = vld [vmem:[%s233 + $0x238] sm:$0xff]
        %v346 = vld [vmem:[%s233 + $0x240] sm:$0xff]
        %v347 = vld [vmem:[%s233 + $0x248] sm:$0xff]
        %v348 = vld [vmem:[%s233 + $0x250] sm:$0xff]
        %v349 = vld [vmem:[%s233 + $0x258] sm:$0xff]
        %v350 = vld [vmem:[%s233 + $0x260] sm:$0xff]
        %v351 = vld [vmem:[%s233 + $0x268] sm:$0xff]
        %v352 = vld [vmem:[%s233 + $0x270] sm:$0xff]
        %v353 = vld [vmem:[%s233 + $0x278] sm:$0xff]
        %v354 = vld [vmem:[%s233 + $0x280] sm:$0xff]
        %v355 = vld [vmem:[%s233 + $0x288] sm:$0xff]
        %v356 = vld [vmem:[%s233 + $0x290] sm:$0xff]
        %v357 = vld [vmem:[%s233 + $0x298] sm:$0xff]
        %v358 = vld [vmem:[%s233 + $0x2a0] sm:$0xff]
        %v359 = vld [vmem:[%s233 + $0x2a8] sm:$0xff]
        %v360 = vld [vmem:[%s233 + $0x2b0] sm:$0xff]
        %v361 = vld [vmem:[%s233 + $0x2b8] sm:$0xff]
        %v362 = vld [vmem:[%s233 + $0x2c0] sm:$0xff]
        %v363 = vld [vmem:[%s233 + $0x2c8] sm:$0xff]
        %v364 = vld [vmem:[%s233 + $0x2d0] sm:$0xff]
        %v365 = vld [vmem:[%s233 + $0x2d8] sm:$0xff]
        %v366 = vld [vmem:[%s233 + $0x2e0] sm:$0xff]
        %v367 = vld [vmem:[%s233 + $0x2e8] sm:$0xff]
        %v368 = vld [vmem:[%s233 + $0x2f0] sm:$0xff]
        %v369 = vld [vmem:[%s233 + $0x2f8] sm:$0xff]
        %v370 = vpack.c.bf16 %v280, %v274
        %v371 = vpack.c.bf16 %v281, %v275
        %v372 = vpack.c.bf16 %v282, %v276
        %v373 = vpack.c.bf16 %v283, %v277
        %v374 = vpack.c.bf16 %v284, %v278
        %v375 = vpack.c.bf16 %v285, %v279
        %v376 = vpack.c.bf16 %v292, %v286
        %v377 = vpack.c.bf16 %v293, %v287
        %v378 = vpack.c.bf16 %v294, %v288
        %v379 = vpack.c.bf16 %v295, %v289
        %v380 = vpack.c.bf16 %v296, %v290
        %v381 = vpack.c.bf16 %v297, %v291
        %v382 = vpack.c.bf16 %v304, %v298
        %v383 = vpack.c.bf16 %v305, %v299
        %v384 = vpack.c.bf16 %v306, %v300
        %v385 = vpack.c.bf16 %v307, %v301
        %v386 = vpack.c.bf16 %v308, %v302
        %v387 = vpack.c.bf16 %v309, %v303
        %v388 = vpack.c.bf16 %v316, %v310
        %v389 = vpack.c.bf16 %v317, %v311
        %v390 = vpack.c.bf16 %v318, %v312
        %v391 = vpack.c.bf16 %v319, %v313
        %v392 = vpack.c.bf16 %v320, %v314
        %v393 = vpack.c.bf16 %v321, %v315
        %v394 = vpack.c.bf16 %v328, %v322
        %v395 = vpack.c.bf16 %v329, %v323
        %v396 = vpack.c.bf16 %v330, %v324
        %v397 = vpack.c.bf16 %v331, %v325
        %v398 = vpack.c.bf16 %v332, %v326
        %v399 = vpack.c.bf16 %v333, %v327
        %v400 = vpack.c.bf16 %v340, %v334
        %v401 = vpack.c.bf16 %v341, %v335
        %v402 = vpack.c.bf16 %v342, %v336
        %v403 = vpack.c.bf16 %v343, %v337
        %v404 = vpack.c.bf16 %v344, %v338
        %v405 = vpack.c.bf16 %v345, %v339
        %v406 = vpack.c.bf16 %v352, %v346
        %v407 = vpack.c.bf16 %v353, %v347
        %v408 = vpack.c.bf16 %v354, %v348
        %v409 = vpack.c.bf16 %v355, %v349
        %v410 = vpack.c.bf16 %v356, %v350
        %v411 = vpack.c.bf16 %v357, %v351
        %v412 = vpack.c.bf16 %v364, %v358
        %v413 = vpack.c.bf16 %v365, %v359
        %v414 = vpack.c.bf16 %v366, %v360
        %v415 = vpack.c.bf16 %v367, %v361
        %v416 = vpack.c.bf16 %v368, %v362
        %v417 = vpack.c.bf16 %v369, %v363
        %v418 = vld [vmem:[#allocation5] sm:$0xff]
        %v419 = vld [vmem:[#allocation5 + $0x8] sm:$0xff]
        %v420 = vld [vmem:[#allocation5 + $0x10] sm:$0xff]
        %v421 = vld [vmem:[#allocation5 + $0x18] sm:$0xff]
        %v422 = vld [vmem:[#allocation5 + $0x20] sm:$0xff]
        %v423 = vld [vmem:[#allocation5 + $0x28] sm:$0xff]
        %v424 = vld [vmem:[#allocation5 + $0x30] sm:$0xff]
        %v425 = vld [vmem:[#allocation5 + $0x38] sm:$0xff]
        %v426 = vld [vmem:[#allocation5 + $0x40] sm:$0xff]
        %v427 = vld [vmem:[#allocation5 + $0x48] sm:$0xff]
        %v428 = vld [vmem:[#allocation5 + $0x50] sm:$0xff]
        %v429 = vld [vmem:[#allocation5 + $0x58] sm:$0xff]
        %v430 = vld [vmem:[#allocation5 + $0x60] sm:$0xff]
        %v431 = vld [vmem:[#allocation5 + $0x68] sm:$0xff]
        %v432 = vld [vmem:[#allocation5 + $0x70] sm:$0xff]
        %v433 = vld [vmem:[#allocation5 + $0x78] sm:$0xff]
        %v434 = vld [vmem:[#allocation5 + $0x80] sm:$0xff]
        %v435 = vld [vmem:[#allocation5 + $0x88] sm:$0xff]
        %v436 = vld [vmem:[#allocation5 + $0x90] sm:$0xff]
        %v437 = vld [vmem:[#allocation5 + $0x98] sm:$0xff]
        %v438 = vld [vmem:[#allocation5 + $0xa0] sm:$0xff]
        %v439 = vld [vmem:[#allocation5 + $0xa8] sm:$0xff]
        %v440 = vld [vmem:[#allocation5 + $0xb0] sm:$0xff]
        %v441 = vld [vmem:[#allocation5 + $0xb8] sm:$0xff]
        %v442 = vld [vmem:[#allocation5 + $0xc0] sm:$0xff]
        %v443 = vld [vmem:[#allocation5 + $0xc8] sm:$0xff]
        %v444 = vld [vmem:[#allocation5 + $0xd0] sm:$0xff]
        %v445 = vld [vmem:[#allocation5 + $0xd8] sm:$0xff]
        %v446 = vld [vmem:[#allocation5 + $0xe0] sm:$0xff]
        %v447 = vld [vmem:[#allocation5 + $0xe8] sm:$0xff]
        %v448 = vld [vmem:[#allocation5 + $0xf0] sm:$0xff]
        %v449 = vld [vmem:[#allocation5 + $0xf8] sm:$0xff]
        %v450 = vld [vmem:[#allocation5 + $0x100] sm:$0xff]
        %v451 = vld [vmem:[#allocation5 + $0x108] sm:$0xff]
        %v452 = vld [vmem:[#allocation5 + $0x110] sm:$0xff]
        %v453 = vld [vmem:[#allocation5 + $0x118] sm:$0xff]
        %v454 = vld [vmem:[#allocation5 + $0x120] sm:$0xff]
        %v455 = vld [vmem:[#allocation5 + $0x128] sm:$0xff]
        %v456 = vld [vmem:[#allocation5 + $0x130] sm:$0xff]
        %v457 = vld [vmem:[#allocation5 + $0x138] sm:$0xff]
        %v458 = vld [vmem:[#allocation5 + $0x140] sm:$0xff]
        %v459 = vld [vmem:[#allocation5 + $0x148] sm:$0xff]
        %v460 = vld [vmem:[#allocation5 + $0x150] sm:$0xff]
        %v461 = vld [vmem:[#allocation5 + $0x158] sm:$0xff]
        %v462 = vld [vmem:[#allocation5 + $0x160] sm:$0xff]
        %v463 = vld [vmem:[#allocation5 + $0x168] sm:$0xff]
        %v464 = vld [vmem:[#allocation5 + $0x170] sm:$0xff]
        %v465 = vld [vmem:[#allocation5 + $0x178] sm:$0xff]
        %v466 = vld [vmem:[#allocation5 + $0x180] sm:$0xff]
        %v467 = vld [vmem:[#allocation5 + $0x188] sm:$0xff]
        %v468 = vld [vmem:[#allocation5 + $0x190] sm:$0xff]
        %v469 = vld [vmem:[#allocation5 + $0x198] sm:$0xff]
        %v470 = vld [vmem:[#allocation5 + $0x1a0] sm:$0xff]
        %v471 = vld [vmem:[#allocation5 + $0x1a8] sm:$0xff]
        %v472 = vld [vmem:[#allocation5 + $0x1b0] sm:$0xff]
        %v473 = vld [vmem:[#allocation5 + $0x1b8] sm:$0xff]
        %v474 = vld [vmem:[#allocation5 + $0x1c0] sm:$0xff]
        %v475 = vld [vmem:[#allocation5 + $0x1c8] sm:$0xff]
        %v476 = vld [vmem:[#allocation5 + $0x1d0] sm:$0xff]
        %v477 = vld [vmem:[#allocation5 + $0x1d8] sm:$0xff]
        %v478 = vld [vmem:[#allocation5 + $0x1e0] sm:$0xff]
        %v479 = vld [vmem:[#allocation5 + $0x1e8] sm:$0xff]
        %v480 = vld [vmem:[#allocation5 + $0x1f0] sm:$0xff]
        %v481 = vld [vmem:[#allocation5 + $0x1f8] sm:$0xff]
        %v482 = vld [vmem:[#allocation5 + $0x200] sm:$0xff]
        %v483 = vld [vmem:[#allocation5 + $0x208] sm:$0xff]
        %v484 = vld [vmem:[#allocation5 + $0x210] sm:$0xff]
        %v485 = vld [vmem:[#allocation5 + $0x218] sm:$0xff]
        %v486 = vld [vmem:[#allocation5 + $0x220] sm:$0xff]
        %v487 = vld [vmem:[#allocation5 + $0x228] sm:$0xff]
        %v488 = vld [vmem:[#allocation5 + $0x230] sm:$0xff]
        %v489 = vld [vmem:[#allocation5 + $0x238] sm:$0xff]
        %v490 = vld [vmem:[#allocation5 + $0x240] sm:$0xff]
        %v491 = vld [vmem:[#allocation5 + $0x248] sm:$0xff]
        %v492 = vld [vmem:[#allocation5 + $0x250] sm:$0xff]
        %v493 = vld [vmem:[#allocation5 + $0x258] sm:$0xff]
        %v494 = vld [vmem:[#allocation5 + $0x260] sm:$0xff]
        %v495 = vld [vmem:[#allocation5 + $0x268] sm:$0xff]
        %v496 = vld [vmem:[#allocation5 + $0x270] sm:$0xff]
        %v497 = vld [vmem:[#allocation5 + $0x278] sm:$0xff]
        %v498 = vld [vmem:[#allocation5 + $0x280] sm:$0xff]
        %v499 = vld [vmem:[#allocation5 + $0x288] sm:$0xff]
        %v500 = vld [vmem:[#allocation5 + $0x290] sm:$0xff]
        %v501 = vld [vmem:[#allocation5 + $0x298] sm:$0xff]
        %v502 = vld [vmem:[#allocation5 + $0x2a0] sm:$0xff]
        %v503 = vld [vmem:[#allocation5 + $0x2a8] sm:$0xff]
        %v504 = vld [vmem:[#allocation5 + $0x2b0] sm:$0xff]
        %v505 = vld [vmem:[#allocation5 + $0x2b8] sm:$0xff]
        %v506 = vld [vmem:[#allocation5 + $0x2c0] sm:$0xff]
        %v507 = vld [vmem:[#allocation5 + $0x2c8] sm:$0xff]
        %v508 = vld [vmem:[#allocation5 + $0x2d0] sm:$0xff]
        %v509 = vld [vmem:[#allocation5 + $0x2d8] sm:$0xff]
        %v510 = vld [vmem:[#allocation5 + $0x2e0] sm:$0xff]
        %v511 = vld [vmem:[#allocation5 + $0x2e8] sm:$0xff]
        %v512 = vld [vmem:[#allocation5 + $0x2f0] sm:$0xff]
        %v513 = vld [vmem:[#allocation5 + $0x2f8] sm:$0xff]
        %v514 = vld [vmem:[%s2] sm:$0x3]
        %v516 = vlaneseq
        %v517 = vshrl.u32 %v516, 7
        %v518 = vsub.s32 0, %v517
        %v519 = vrot.slane %v514, %v518
        %v520 = vlaneseq
        %v521 = vshrl.u32 %v520, 7
        %v522 = vsub.s32 1, %v521
        %v523 = vrot.slane %v514, %v522
        %v622 = vunpack.c.l.b16 %v418
        %v623 = vunpack.c.h.b16 %v418
        %v624 = vunpack.c.l.b16 %v419
        %v625 = vunpack.c.h.b16 %v419
        %v626 = vunpack.c.l.b16 %v420
        %v627 = vunpack.c.h.b16 %v420
        %v628 = vunpack.c.l.b16 %v421
        %v629 = vunpack.c.h.b16 %v421
        %v630 = vunpack.c.l.b16 %v422
        %v631 = vunpack.c.h.b16 %v422
        %v632 = vunpack.c.l.b16 %v423
        %v633 = vunpack.c.h.b16 %v423
        %v634 = vunpack.c.l.b16 %v424
        %v635 = vunpack.c.h.b16 %v424
        %v636 = vunpack.c.l.b16 %v425
        %v637 = vunpack.c.h.b16 %v425
        %v638 = vunpack.c.l.b16 %v426
        %v639 = vunpack.c.h.b16 %v426
        %v640 = vunpack.c.l.b16 %v427
        %v641 = vunpack.c.h.b16 %v427
        %v642 = vunpack.c.l.b16 %v428
        %v643 = vunpack.c.h.b16 %v428
        %v644 = vunpack.c.l.b16 %v429
        %v645 = vunpack.c.h.b16 %v429
        %v646 = vunpack.c.l.b16 %v430
        %v647 = vunpack.c.h.b16 %v430
        %v648 = vunpack.c.l.b16 %v431
        %v649 = vunpack.c.h.b16 %v431
        %v650 = vunpack.c.l.b16 %v432
        %v651 = vunpack.c.h.b16 %v432
        %v652 = vunpack.c.l.b16 %v433
        %v653 = vunpack.c.h.b16 %v433
        %v654 = vunpack.c.l.b16 %v434
        %v655 = vunpack.c.h.b16 %v434
        %v656 = vunpack.c.l.b16 %v435
        %v657 = vunpack.c.h.b16 %v435
        %v658 = vunpack.c.l.b16 %v436
        %v659 = vunpack.c.h.b16 %v436
        %v660 = vunpack.c.l.b16 %v437
        %v661 = vunpack.c.h.b16 %v437
        %v662 = vunpack.c.l.b16 %v438
        %v663 = vunpack.c.h.b16 %v438
        %v664 = vunpack.c.l.b16 %v439
        %v665 = vunpack.c.h.b16 %v439
        %v666 = vunpack.c.l.b16 %v440
        %v667 = vunpack.c.h.b16 %v440
        %v668 = vunpack.c.l.b16 %v441
        %v669 = vunpack.c.h.b16 %v441
        %v670 = vunpack.c.l.b16 %v442
        %v671 = vunpack.c.h.b16 %v442
        %v672 = vunpack.c.l.b16 %v443
        %v673 = vunpack.c.h.b16 %v443
        %v674 = vunpack.c.l.b16 %v444
        %v675 = vunpack.c.h.b16 %v444
        %v676 = vunpack.c.l.b16 %v445
        %v677 = vunpack.c.h.b16 %v445
        %v678 = vunpack.c.l.b16 %v446
        %v679 = vunpack.c.h.b16 %v446
        %v680 = vunpack.c.l.b16 %v447
        %v681 = vunpack.c.h.b16 %v447
        %v682 = vunpack.c.l.b16 %v448
        %v683 = vunpack.c.h.b16 %v448
        %v684 = vunpack.c.l.b16 %v449
        %v685 = vunpack.c.h.b16 %v449
        %v686 = vunpack.c.l.b16 %v450
        %v687 = vunpack.c.h.b16 %v450
        %v688 = vunpack.c.l.b16 %v451
        %v689 = vunpack.c.h.b16 %v451
        %v690 = vunpack.c.l.b16 %v452
        %v691 = vunpack.c.h.b16 %v452
        %v692 = vunpack.c.l.b16 %v453
        %v693 = vunpack.c.h.b16 %v453
        %v694 = vunpack.c.l.b16 %v454
        %v695 = vunpack.c.h.b16 %v454
        %v696 = vunpack.c.l.b16 %v455
        %v697 = vunpack.c.h.b16 %v455
        %v698 = vunpack.c.l.b16 %v456
        %v699 = vunpack.c.h.b16 %v456
        %v700 = vunpack.c.l.b16 %v457
        %v701 = vunpack.c.h.b16 %v457
        %v702 = vunpack.c.l.b16 %v458
        %v703 = vunpack.c.h.b16 %v458
        %v704 = vunpack.c.l.b16 %v459
        %v705 = vunpack.c.h.b16 %v459
        %v706 = vunpack.c.l.b16 %v460
        %v707 = vunpack.c.h.b16 %v460
        %v708 = vunpack.c.l.b16 %v461
        %v709 = vunpack.c.h.b16 %v461
        %v710 = vunpack.c.l.b16 %v462
        %v711 = vunpack.c.h.b16 %v462
        %v712 = vunpack.c.l.b16 %v463
        %v713 = vunpack.c.h.b16 %v463
        %v714 = vunpack.c.l.b16 %v464
        %v715 = vunpack.c.h.b16 %v464
        %v716 = vunpack.c.l.b16 %v465
        %v717 = vunpack.c.h.b16 %v465
        %v718 = vunpack.c.l.b16 %v466
        %v719 = vunpack.c.h.b16 %v466
        %v720 = vunpack.c.l.b16 %v467
        %v721 = vunpack.c.h.b16 %v467
        %v722 = vunpack.c.l.b16 %v468
        %v723 = vunpack.c.h.b16 %v468
        %v724 = vunpack.c.l.b16 %v469
        %v725 = vunpack.c.h.b16 %v469
        %v726 = vunpack.c.l.b16 %v470
        %v727 = vunpack.c.h.b16 %v470
        %v728 = vunpack.c.l.b16 %v471
        %v729 = vunpack.c.h.b16 %v471
        %v730 = vunpack.c.l.b16 %v472
        %v731 = vunpack.c.h.b16 %v472
        %v732 = vunpack.c.l.b16 %v473
        %v733 = vunpack.c.h.b16 %v473
        %v734 = vunpack.c.l.b16 %v474
        %v735 = vunpack.c.h.b16 %v474
        %v736 = vunpack.c.l.b16 %v475
        %v737 = vunpack.c.h.b16 %v475
        %v738 = vunpack.c.l.b16 %v476
        %v739 = vunpack.c.h.b16 %v476
        %v740 = vunpack.c.l.b16 %v477
        %v741 = vunpack.c.h.b16 %v477
        %v742 = vunpack.c.l.b16 %v478
        %v743 = vunpack.c.h.b16 %v478
        %v744 = vunpack.c.l.b16 %v479
        %v745 = vunpack.c.h.b16 %v479
        %v746 = vunpack.c.l.b16 %v480
        %v747 = vunpack.c.h.b16 %v480
        %v748 = vunpack.c.l.b16 %v481
        %v749 = vunpack.c.h.b16 %v481
        %v750 = vunpack.c.l.b16 %v482
        %v751 = vunpack.c.h.b16 %v482
        %v752 = vunpack.c.l.b16 %v483
        %v753 = vunpack.c.h.b16 %v483
        %v754 = vunpack.c.l.b16 %v484
        %v755 = vunpack.c.h.b16 %v484
        %v756 = vunpack.c.l.b16 %v485
        %v757 = vunpack.c.h.b16 %v485
        %v758 = vunpack.c.l.b16 %v486
        %v759 = vunpack.c.h.b16 %v486
        %v760 = vunpack.c.l.b16 %v487
        %v761 = vunpack.c.h.b16 %v487
        %v762 = vunpack.c.l.b16 %v488
        %v763 = vunpack.c.h.b16 %v488
        %v764 = vunpack.c.l.b16 %v489
        %v765 = vunpack.c.h.b16 %v489
        %v766 = vunpack.c.l.b16 %v490
        %v767 = vunpack.c.h.b16 %v490
        %v768 = vunpack.c.l.b16 %v491
        %v769 = vunpack.c.h.b16 %v491
        %v770 = vunpack.c.l.b16 %v492
        %v771 = vunpack.c.h.b16 %v492
        %v772 = vunpack.c.l.b16 %v493
        %v773 = vunpack.c.h.b16 %v493
        %v774 = vunpack.c.l.b16 %v494
        %v775 = vunpack.c.h.b16 %v494
        %v776 = vunpack.c.l.b16 %v495
        %v777 = vunpack.c.h.b16 %v495
        %v778 = vunpack.c.l.b16 %v496
        %v779 = vunpack.c.h.b16 %v496
        %v780 = vunpack.c.l.b16 %v497
        %v781 = vunpack.c.h.b16 %v497
        %v782 = vunpack.c.l.b16 %v498
        %v783 = vunpack.c.h.b16 %v498
        %v784 = vunpack.c.l.b16 %v499
        %v785 = vunpack.c.h.b16 %v499
        %v786 = vunpack.c.l.b16 %v500
        %v787 = vunpack.c.h.b16 %v500
        %v788 = vunpack.c.l.b16 %v501
        %v789 = vunpack.c.h.b16 %v501
        %v790 = vunpack.c.l.b16 %v502
        %v791 = vunpack.c.h.b16 %v502
        %v792 = vunpack.c.l.b16 %v503
        %v793 = vunpack.c.h.b16 %v503
        %v794 = vunpack.c.l.b16 %v504
        %v795 = vunpack.c.h.b16 %v504
        %v796 = vunpack.c.l.b16 %v505
        %v797 = vunpack.c.h.b16 %v505
        %v798 = vunpack.c.l.b16 %v506
        %v799 = vunpack.c.h.b16 %v506
        %v800 = vunpack.c.l.b16 %v507
        %v801 = vunpack.c.h.b16 %v507
        %v802 = vunpack.c.l.b16 %v508
        %v803 = vunpack.c.h.b16 %v508
        %v804 = vunpack.c.l.b16 %v509
        %v805 = vunpack.c.h.b16 %v509
        %v806 = vunpack.c.l.b16 %v510
        %v807 = vunpack.c.h.b16 %v510
        %v808 = vunpack.c.l.b16 %v511
        %v809 = vunpack.c.h.b16 %v511
        %v810 = vunpack.c.l.b16 %v512
        %v811 = vunpack.c.h.b16 %v512
        %v812 = vunpack.c.l.b16 %v513
        %v813 = vunpack.c.h.b16 %v513
        %v814 = vpack.c.b16 %v624, %v622
        %v815 = vpack.c.b16 %v625, %v623
        %v816 = vpack.c.b16 %v628, %v626
        %v817 = vpack.c.b16 %v629, %v627
        %v818 = vpack.c.b16 %v632, %v630
        %v819 = vpack.c.b16 %v633, %v631
        %v820 = vpack.c.b16 %v636, %v634
        %v821 = vpack.c.b16 %v637, %v635
        %v822 = vpack.c.b16 %v640, %v638
        %v823 = vpack.c.b16 %v641, %v639
        %v824 = vpack.c.b16 %v644, %v642
        %v825 = vpack.c.b16 %v645, %v643
        %v826 = vpack.c.b16 %v648, %v646
        %v827 = vpack.c.b16 %v649, %v647
        %v828 = vpack.c.b16 %v652, %v650
        %v829 = vpack.c.b16 %v653, %v651
        %v830 = vpack.c.b16 %v656, %v654
        %v831 = vpack.c.b16 %v657, %v655
        %v832 = vpack.c.b16 %v660, %v658
        %v833 = vpack.c.b16 %v661, %v659
        %v834 = vpack.c.b16 %v664, %v662
        %v835 = vpack.c.b16 %v665, %v663
        %v836 = vpack.c.b16 %v668, %v666
        %v837 = vpack.c.b16 %v669, %v667
        %v838 = vpack.c.b16 %v672, %v670
        %v839 = vpack.c.b16 %v673, %v671
        %v840 = vpack.c.b16 %v676, %v674
        %v841 = vpack.c.b16 %v677, %v675
        %v842 = vpack.c.b16 %v680, %v678
        %v843 = vpack.c.b16 %v681, %v679
        %v844 = vpack.c.b16 %v684, %v682
        %v845 = vpack.c.b16 %v685, %v683
        %v846 = vpack.c.b16 %v688, %v686
        %v847 = vpack.c.b16 %v689, %v687
        %v848 = vpack.c.b16 %v692, %v690
        %v849 = vpack.c.b16 %v693, %v691
        %v850 = vpack.c.b16 %v696, %v694
        %v851 = vpack.c.b16 %v697, %v695
        %v852 = vpack.c.b16 %v700, %v698
        %v853 = vpack.c.b16 %v701, %v699
        %v854 = vpack.c.b16 %v704, %v702
        %v855 = vpack.c.b16 %v705, %v703
        %v856 = vpack.c.b16 %v708, %v706
        %v857 = vpack.c.b16 %v709, %v707
        %v858 = vpack.c.b16 %v712, %v710
        %v859 = vpack.c.b16 %v713, %v711
        %v860 = vpack.c.b16 %v716, %v714
        %v861 = vpack.c.b16 %v717, %v715
        %v862 = vpack.c.b16 %v720, %v718
        %v863 = vpack.c.b16 %v721, %v719
        %v864 = vpack.c.b16 %v724, %v722
        %v865 = vpack.c.b16 %v725, %v723
        %v866 = vpack.c.b16 %v728, %v726
        %v867 = vpack.c.b16 %v729, %v727
        %v868 = vpack.c.b16 %v732, %v730
        %v869 = vpack.c.b16 %v733, %v731
        %v870 = vpack.c.b16 %v736, %v734
        %v871 = vpack.c.b16 %v737, %v735
        %v872 = vpack.c.b16 %v740, %v738
        %v873 = vpack.c.b16 %v741, %v739
        %v874 = vpack.c.b16 %v744, %v742
        %v875 = vpack.c.b16 %v745, %v743
        %v876 = vpack.c.b16 %v748, %v746
        %v877 = vpack.c.b16 %v749, %v747
        %v878 = vpack.c.b16 %v752, %v750
        %v879 = vpack.c.b16 %v753, %v751
        %v880 = vpack.c.b16 %v756, %v754
        %v881 = vpack.c.b16 %v757, %v755
        %v882 = vpack.c.b16 %v760, %v758
        %v883 = vpack.c.b16 %v761, %v759
        %v884 = vpack.c.b16 %v764, %v762
        %v885 = vpack.c.b16 %v765, %v763
        %v886 = vpack.c.b16 %v768, %v766
        %v887 = vpack.c.b16 %v769, %v767
        %v888 = vpack.c.b16 %v772, %v770
        %v889 = vpack.c.b16 %v773, %v771
        %v890 = vpack.c.b16 %v776, %v774
        %v891 = vpack.c.b16 %v777, %v775
        %v892 = vpack.c.b16 %v780, %v778
        %v893 = vpack.c.b16 %v781, %v779
        %v894 = vpack.c.b16 %v784, %v782
        %v895 = vpack.c.b16 %v785, %v783
        %v896 = vpack.c.b16 %v788, %v786
        %v897 = vpack.c.b16 %v789, %v787
        %v898 = vpack.c.b16 %v792, %v790
        %v899 = vpack.c.b16 %v793, %v791
        %v900 = vpack.c.b16 %v796, %v794
        %v901 = vpack.c.b16 %v797, %v795
        %v902 = vpack.c.b16 %v800, %v798
        %v903 = vpack.c.b16 %v801, %v799
        %v904 = vpack.c.b16 %v804, %v802
        %v905 = vpack.c.b16 %v805, %v803
        %v906 = vpack.c.b16 %v808, %v806
        %v907 = vpack.c.b16 %v809, %v807
        %v908 = vpack.c.b16 %v812, %v810
        %v909 = vpack.c.b16 %v813, %v811
        %1006 = vmatprep.subr.bf16.mxu0 %v815
        %1007 = vmatpush1.bf16.msra.mxu0 %v814
        %1008 = vmatprep.subr.bf16.mxu0 %v817
        %1009 = vmatpush1.bf16.msra.mxu0 %v816
        %1010 = vmatprep.subr.bf16.mxu0 %v819
        %1011 = vmatpush1.bf16.msra.mxu0 %v818
        %1012 = vmatprep.subr.bf16.mxu0 %v821
        %1013 = vmatpush1.bf16.msra.mxu0 %v820
        %1014 = vmatprep.subr.bf16.mxu0 %v823
        %1015 = vmatpush1.bf16.msra.mxu0 %v822
        %1016 = vmatprep.subr.bf16.mxu0 %v825
        %1017 = vmatpush1.bf16.msra.mxu0 %v824
        %1018 = vmatprep.subr.bf16.mxu0 %v827
        %1019 = vmatpush1.bf16.msra.mxu0 %v826
        %1020 = vmatprep.subr.bf16.mxu0 %v829
        %1021 = vmatpush1.bf16.msra.mxu0 %v828
        %1022 = vmatprep.subr.bf16.mxu0 %v831
        %1023 = vmatpush1.bf16.msra.mxu0 %v830
        %1024 = vmatprep.subr.bf16.mxu0 %v833
        %1025 = vmatpush1.bf16.msra.mxu0 %v832
        %1026 = vmatprep.subr.bf16.mxu0 %v835
        %1027 = vmatpush1.bf16.msra.mxu0 %v834
        %1028 = vmatprep.subr.bf16.mxu0 %v837
        %1029 = vmatpush1.bf16.msra.mxu0 %v836
        %1030 = vmatprep.subr.bf16.mxu0 %v839
        %1031 = vmatpush1.bf16.msra.mxu0 %v838
        %1032 = vmatprep.subr.bf16.mxu0 %v841
        %1033 = vmatpush1.bf16.msra.mxu0 %v840
        %1034 = vmatprep.subr.bf16.mxu0 %v843
        %1035 = vmatpush1.bf16.msra.mxu0 %v842
        %1036 = vmatprep.subr.bf16.mxu0 %v845
        %1037 = vmatpush1.bf16.msra.mxu0 %v844
        %1038 = vmatprep.mubr.bf16.mxu0 %v371
        %1039 = vmatmul.mubr.bf16.gmra.mrb[0].mxu0 %v370
        %v1040 = vpop.f32.mrb[0].mxu0
        %v1041 = vadd.f32 %v519, %v1040
        %v1042 = vpop.f32.mrb[0].mxu0
        %v1043 = vadd.f32 %v523, %v1042
        %v1044 = vpop.f32.mrb[0].mxu0
        %v1045 = vadd.f32 %v519, %v1044
        %v1046 = vpop.f32.mrb[0].mxu0
        %v1047 = vadd.f32 %v523, %v1046
        %1048 = vmatprep.mubr.bf16.mxu0 %v377
        %1049 = vmatmul.mubr.bf16.gmra.mrb[0].mxu0 %v376
        %v1050 = vpop.f32.mrb[0].mxu0
        %v1051 = vadd.f32 %v519, %v1050
        %v1052 = vpop.f32.mrb[0].mxu0
        %v1053 = vadd.f32 %v523, %v1052
        %v1054 = vpop.f32.mrb[0].mxu0
        %v1055 = vadd.f32 %v519, %v1054
        %v1056 = vpop.f32.mrb[0].mxu0
        %v1057 = vadd.f32 %v523, %v1056
        %1058 = vmatprep.mubr.bf16.mxu0 %v383
        %1059 = vmatmul.mubr.bf16.gmra.mrb[0].mxu0 %v382
        %v1060 = vpop.f32.mrb[0].mxu0
        %v1061 = vadd.f32 %v519, %v1060
        %v1062 = vpop.f32.mrb[0].mxu0
        %v1063 = vadd.f32 %v523, %v1062
        %v1064 = vpop.f32.mrb[0].mxu0
        %v1065 = vadd.f32 %v519, %v1064
        %v1066 = vpop.f32.mrb[0].mxu0
        %v1067 = vadd.f32 %v523, %v1066
        %1068 = vmatprep.mubr.bf16.mxu0 %v389
        %1069 = vmatmul.mubr.bf16.gmra.mrb[0].mxu0 %v388
        %v1070 = vpop.f32.mrb[0].mxu0
        %v1071 = vadd.f32 %v519, %v1070
        %v1072 = vpop.f32.mrb[0].mxu0
        %v1073 = vadd.f32 %v523, %v1072
        %v1074 = vpop.f32.mrb[0].mxu0
        %v1075 = vadd.f32 %v519, %v1074
        %v1076 = vpop.f32.mrb[0].mxu0
        %v1077 = vadd.f32 %v523, %v1076
        %1078 = vmatprep.mubr.bf16.mxu0 %v395
        %1079 = vmatmul.mubr.bf16.gmra.mrb[0].mxu0 %v394
        %v1080 = vpop.f32.mrb[0].mxu0
        %v1081 = vadd.f32 %v519, %v1080
        %v1082 = vpop.f32.mrb[0].mxu0
        %v1083 = vadd.f32 %v523, %v1082
        %v1084 = vpop.f32.mrb[0].mxu0
        %v1085 = vadd.f32 %v519, %v1084
        %v1086 = vpop.f32.mrb[0].mxu0
        %v1087 = vadd.f32 %v523, %v1086
        %1088 = vmatprep.mubr.bf16.mxu0 %v401
        %1089 = vmatmul.mubr.bf16.gmra.mrb[0].mxu0 %v400
        %v1090 = vpop.f32.mrb[0].mxu0
        %v1091 = vadd.f32 %v519, %v1090
        %v1092 = vpop.f32.mrb[0].mxu0
        %v1093 = vadd.f32 %v523, %v1092
        %v1094 = vpop.f32.mrb[0].mxu0
        %v1095 = vadd.f32 %v519, %v1094
        %v1096 = vpop.f32.mrb[0].mxu0
        %v1097 = vadd.f32 %v523, %v1096
        %1098 = vmatprep.mubr.bf16.mxu0 %v407
        %1099 = vmatmul.mubr.bf16.gmra.mrb[0].mxu0 %v406
        %v1100 = vpop.f32.mrb[0].mxu0
        %v1101 = vadd.f32 %v519, %v1100
        %v1102 = vpop.f32.mrb[0].mxu0
        %v1103 = vadd.f32 %v523, %v1102
        %v1104 = vpop.f32.mrb[0].mxu0
        %v1105 = vadd.f32 %v519, %v1104
        %v1106 = vpop.f32.mrb[0].mxu0
        %v1107 = vadd.f32 %v523, %v1106
        %1108 = vmatprep.mubr.bf16.mxu0 %v413
        %1109 = vmatmul.mubr.bf16.gmra.mrb[0].mxu0 %v412
        %v1110 = vpop.f32.mrb[0].mxu0
        %v1111 = vadd.f32 %v519, %v1110
        %v1112 = vpop.f32.mrb[0].mxu0
        %v1113 = vadd.f32 %v523, %v1112
        %v1114 = vpop.f32.mrb[0].mxu0
        %v1115 = vadd.f32 %v519, %v1114
        %v1116 = vpop.f32.mrb[0].mxu0
        %v1117 = vadd.f32 %v523, %v1116
        %1118 = vdwg.mxu0
        %1119 = vmatprep.subr.bf16.mxu0 %v847
        %1120 = vmatpush1.bf16.msra.mxu0 %v846
        %1121 = vmatprep.subr.bf16.mxu0 %v849
        %1122 = vmatpush1.bf16.msra.mxu0 %v848
        %1123 = vmatprep.subr.bf16.mxu0 %v851
        %1124 = vmatpush1.bf16.msra.mxu0 %v850
        %1125 = vmatprep.subr.bf16.mxu0 %v853
        %1126 = vmatpush1.bf16.msra.mxu0 %v852
        %1127 = vmatprep.subr.bf16.mxu0 %v855
        %1128 = vmatpush1.bf16.msra.mxu0 %v854
        %1129 = vmatprep.subr.bf16.mxu0 %v857
        %1130 = vmatpush1.bf16.msra.mxu0 %v856
        %1131 = vmatprep.subr.bf16.mxu0 %v859
        %1132 = vmatpush1.bf16.msra.mxu0 %v858
        %1133 = vmatprep.subr.bf16.mxu0 %v861
        %1134 = vmatpush1.bf16.msra.mxu0 %v860
        %1135 = vmatprep.subr.bf16.mxu0 %v863
        %1136 = vmatpush1.bf16.msra.mxu0 %v862
        %1137 = vmatprep.subr.bf16.mxu0 %v865
        %1138 = vmatpush1.bf16.msra.mxu0 %v864
        %1139 = vmatprep.subr.bf16.mxu0 %v867
        %1140 = vmatpush1.bf16.msra.mxu0 %v866
        %1141 = vmatprep.subr.bf16.mxu0 %v869
        %1142 = vmatpush1.bf16.msra.mxu0 %v868
        %1143 = vmatprep.subr.bf16.mxu0 %v871
        %1144 = vmatpush1.bf16.msra.mxu0 %v870
        %1145 = vmatprep.subr.bf16.mxu0 %v873
        %1146 = vmatpush1.bf16.msra.mxu0 %v872
        %1147 = vmatprep.subr.bf16.mxu0 %v875
        %1148 = vmatpush1.bf16.msra.mxu0 %v874
        %1149 = vmatprep.subr.bf16.mxu0 %v877
        %1150 = vmatpush1.bf16.msra.mxu0 %v876
        %1151 = vmatprep.mubr.bf16.mxu0 %v373
        %1152 = vmatmul.mubr.bf16.gmra.mrb[0].mxu0 %v372
        %v1153 = vpop.f32.mrb[0].mxu0
        %v1154 = vadd.f32 %v1041, %v1153
        %v1155 = vpop.f32.mrb[0].mxu0
        %v1156 = vadd.f32 %v1043, %v1155
        %v1157 = vpop.f32.mrb[0].mxu0
        %v1158 = vadd.f32 %v1045, %v1157
        %v1159 = vpop.f32.mrb[0].mxu0
        %v1160 = vadd.f32 %v1047, %v1159
        %1161 = vmatprep.mubr.bf16.mxu0 %v379
        %1162 = vmatmul.mubr.bf16.gmra.mrb[0].mxu0 %v378
        %v1163 = vpop.f32.mrb[0].mxu0
        %v1164 = vadd.f32 %v1051, %v1163
        %v1165 = vpop.f32.mrb[0].mxu0
        %v1166 = vadd.f32 %v1053, %v1165
        %v1167 = vpop.f32.mrb[0].mxu0
        %v1168 = vadd.f32 %v1055, %v1167
        %v1169 = vpop.f32.mrb[0].mxu0
        %v1170 = vadd.f32 %v1057, %v1169
        %1171 = vmatprep.mubr.bf16.mxu0 %v385
        %1172 = vmatmul.mubr.bf16.gmra.mrb[0].mxu0 %v384
        %v1173 = vpop.f32.mrb[0].mxu0
        %v1174 = vadd.f32 %v1061, %v1173
        %v1175 = vpop.f32.mrb[0].mxu0
        %v1176 = vadd.f32 %v1063, %v1175
        %v1177 = vpop.f32.mrb[0].mxu0
        %v1178 = vadd.f32 %v1065, %v1177
        %v1179 = vpop.f32.mrb[0].mxu0
        %v1180 = vadd.f32 %v1067, %v1179
        %1181 = vmatprep.mubr.bf16.mxu0 %v391
        %1182 = vmatmul.mubr.bf16.gmra.mrb[0].mxu0 %v390
        %v1183 = vpop.f32.mrb[0].mxu0
        %v1184 = vadd.f32 %v1071, %v1183
        %v1185 = vpop.f32.mrb[0].mxu0
        %v1186 = vadd.f32 %v1073, %v1185
        %v1187 = vpop.f32.mrb[0].mxu0
        %v1188 = vadd.f32 %v1075, %v1187
        %v1189 = vpop.f32.mrb[0].mxu0
        %v1190 = vadd.f32 %v1077, %v1189
        %1191 = vmatprep.mubr.bf16.mxu0 %v397
        %1192 = vmatmul.mubr.bf16.gmra.mrb[0].mxu0 %v396
        %v1193 = vpop.f32.mrb[0].mxu0
        %v1194 = vadd.f32 %v1081, %v1193
        %v1195 = vpop.f32.mrb[0].mxu0
        %v1196 = vadd.f32 %v1083, %v1195
        %v1197 = vpop.f32.mrb[0].mxu0
        %v1198 = vadd.f32 %v1085, %v1197
        %v1199 = vpop.f32.mrb[0].mxu0
        %v1200 = vadd.f32 %v1087, %v1199
        %1201 = vmatprep.mubr.bf16.mxu0 %v403
        %1202 = vmatmul.mubr.bf16.gmra.mrb[0].mxu0 %v402
        %v1203 = vpop.f32.mrb[0].mxu0
        %v1204 = vadd.f32 %v1091, %v1203
        %v1205 = vpop.f32.mrb[0].mxu0
        %v1206 = vadd.f32 %v1093, %v1205
        %v1207 = vpop.f32.mrb[0].mxu0
        %v1208 = vadd.f32 %v1095, %v1207
        %v1209 = vpop.f32.mrb[0].mxu0
        %v1210 = vadd.f32 %v1097, %v1209
        %1211 = vmatprep.mubr.bf16.mxu0 %v409
        %1212 = vmatmul.mubr.bf16.gmra.mrb[0].mxu0 %v408
        %v1213 = vpop.f32.mrb[0].mxu0
        %v1214 = vadd.f32 %v1101, %v1213
        %v1215 = vpop.f32.mrb[0].mxu0
        %v1216 = vadd.f32 %v1103, %v1215
        %v1217 = vpop.f32.mrb[0].mxu0
        %v1218 = vadd.f32 %v1105, %v1217
        %v1219 = vpop.f32.mrb[0].mxu0
        %v1220 = vadd.f32 %v1107, %v1219
        %1221 = vmatprep.mubr.bf16.mxu0 %v415
        %1222 = vmatmul.mubr.bf16.gmra.mrb[0].mxu0 %v414
        %v1223 = vpop.f32.mrb[0].mxu0
        %v1224 = vadd.f32 %v1111, %v1223
        %v1225 = vpop.f32.mrb[0].mxu0
        %v1226 = vadd.f32 %v1113, %v1225
        %v1227 = vpop.f32.mrb[0].mxu0
        %v1228 = vadd.f32 %v1115, %v1227
        %v1229 = vpop.f32.mrb[0].mxu0
        %v1230 = vadd.f32 %v1117, %v1229
        %1231 = vdwg.mxu0
        %1232 = vmatprep.subr.bf16.mxu0 %v879
        %1233 = vmatpush1.bf16.msra.mxu0 %v878
        %1234 = vmatprep.subr.bf16.mxu0 %v881
        %1235 = vmatpush1.bf16.msra.mxu0 %v880
        %1236 = vmatprep.subr.bf16.mxu0 %v883
        %1237 = vmatpush1.bf16.msra.mxu0 %v882
        %1238 = vmatprep.subr.bf16.mxu0 %v885
        %1239 = vmatpush1.bf16.msra.mxu0 %v884
        %1240 = vmatprep.subr.bf16.mxu0 %v887
        %1241 = vmatpush1.bf16.msra.mxu0 %v886
        %1242 = vmatprep.subr.bf16.mxu0 %v889
        %1243 = vmatpush1.bf16.msra.mxu0 %v888
        %1244 = vmatprep.subr.bf16.mxu0 %v891
        %1245 = vmatpush1.bf16.msra.mxu0 %v890
        %1246 = vmatprep.subr.bf16.mxu0 %v893
        %1247 = vmatpush1.bf16.msra.mxu0 %v892
        %1248 = vmatprep.subr.bf16.mxu0 %v895
        %1249 = vmatpush1.bf16.msra.mxu0 %v894
        %1250 = vmatprep.subr.bf16.mxu0 %v897
        %1251 = vmatpush1.bf16.msra.mxu0 %v896
        %1252 = vmatprep.subr.bf16.mxu0 %v899
        %1253 = vmatpush1.bf16.msra.mxu0 %v898
        %1254 = vmatprep.subr.bf16.mxu0 %v901
        %1255 = vmatpush1.bf16.msra.mxu0 %v900
        %1256 = vmatprep.subr.bf16.mxu0 %v903
        %1257 = vmatpush1.bf16.msra.mxu0 %v902
        %1258 = vmatprep.subr.bf16.mxu0 %v905
        %1259 = vmatpush1.bf16.msra.mxu0 %v904
        %1260 = vmatprep.subr.bf16.mxu0 %v907
        %1261 = vmatpush1.bf16.msra.mxu0 %v906
        %1262 = vmatprep.subr.bf16.mxu0 %v909
        %1263 = vmatpush1.bf16.msra.mxu0 %v908
        %1264 = vmatprep.mubr.bf16.mxu0 %v375
        %1265 = vmatmul.mubr.bf16.gmra.mrb[0].mxu0 %v374
        %v1266 = vpop.f32.mrb[0].mxu0
        %v1267 = vadd.f32 %v1154, %v1266
        %v1268 = vpop.f32.mrb[0].mxu0
        %v1269 = vadd.f32 %v1156, %v1268
        %v1270 = vpop.f32.mrb[0].mxu0
        %v1271 = vadd.f32 %v1158, %v1270
        %v1272 = vpop.f32.mrb[0].mxu0
        %v1273 = vadd.f32 %v1160, %v1272
        %1274 = vmatprep.mubr.bf16.mxu0 %v381
        %1275 = vmatmul.mubr.bf16.gmra.mrb[0].mxu0 %v380
        %v1276 = vpop.f32.mrb[0].mxu0
        %v1277 = vadd.f32 %v1164, %v1276
        %v1278 = vpop.f32.mrb[0].mxu0
        %v1279 = vadd.f32 %v1166, %v1278
        %v1280 = vpop.f32.mrb[0].mxu0
        %v1281 = vadd.f32 %v1168, %v1280
        %v1282 = vpop.f32.mrb[0].mxu0
        %v1283 = vadd.f32 %v1170, %v1282
        %1284 = vmatprep.mubr.bf16.mxu0 %v387
        %1285 = vmatmul.mubr.bf16.gmra.mrb[0].mxu0 %v386
        %v1286 = vpop.f32.mrb[0].mxu0
        %v1287 = vadd.f32 %v1174, %v1286
        %v1288 = vpop.f32.mrb[0].mxu0
        %v1289 = vadd.f32 %v1176, %v1288
        %v1290 = vpop.f32.mrb[0].mxu0
        %v1291 = vadd.f32 %v1178, %v1290
        %v1292 = vpop.f32.mrb[0].mxu0
        %v1293 = vadd.f32 %v1180, %v1292
        %1294 = vmatprep.mubr.bf16.mxu0 %v393
        %1295 = vmatmul.mubr.bf16.gmra.mrb[0].mxu0 %v392
        %v1296 = vpop.f32.mrb[0].mxu0
        %v1297 = vadd.f32 %v1184, %v1296
        %v1298 = vpop.f32.mrb[0].mxu0
        %v1299 = vadd.f32 %v1186, %v1298
        %v1300 = vpop.f32.mrb[0].mxu0
        %v1301 = vadd.f32 %v1188, %v1300
        %v1302 = vpop.f32.mrb[0].mxu0
        %v1303 = vadd.f32 %v1190, %v1302
        %1304 = vmatprep.mubr.bf16.mxu0 %v399
        %1305 = vmatmul.mubr.bf16.gmra.mrb[0].mxu0 %v398
        %v1306 = vpop.f32.mrb[0].mxu0
        %v1307 = vadd.f32 %v1194, %v1306
        %v1308 = vpop.f32.mrb[0].mxu0
        %v1309 = vadd.f32 %v1196, %v1308
        %v1310 = vpop.f32.mrb[0].mxu0
        %v1311 = vadd.f32 %v1198, %v1310
        %v1312 = vpop.f32.mrb[0].mxu0
        %v1313 = vadd.f32 %v1200, %v1312
        %1314 = vmatprep.mubr.bf16.mxu0 %v405
        %1315 = vmatmul.mubr.bf16.gmra.mrb[0].mxu0 %v404
        %v1316 = vpop.f32.mrb[0].mxu0
        %v1317 = vadd.f32 %v1204, %v1316
        %v1318 = vpop.f32.mrb[0].mxu0
        %v1319 = vadd.f32 %v1206, %v1318
        %v1320 = vpop.f32.mrb[0].mxu0
        %v1321 = vadd.f32 %v1208, %v1320
        %v1322 = vpop.f32.mrb[0].mxu0
        %v1323 = vadd.f32 %v1210, %v1322
        %1324 = vmatprep.mubr.bf16.mxu0 %v411
        %1325 = vmatmul.mubr.bf16.gmra.mrb[0].mxu0 %v410
        %v1326 = vpop.f32.mrb[0].mxu0
        %v1327 = vadd.f32 %v1214, %v1326
        %v1328 = vpop.f32.mrb[0].mxu0
        %v1329 = vadd.f32 %v1216, %v1328
        %v1330 = vpop.f32.mrb[0].mxu0
        %v1331 = vadd.f32 %v1218, %v1330
        %v1332 = vpop.f32.mrb[0].mxu0
        %v1333 = vadd.f32 %v1220, %v1332
        %1334 = vmatprep.mubr.bf16.mxu0 %v417
        %1335 = vmatmul.mubr.bf16.gmra.mrb[0].mxu0 %v416
        %v1336 = vpop.f32.mrb[0].mxu0
        %v1337 = vadd.f32 %v1224, %v1336
        %v1338 = vpop.f32.mrb[0].mxu0
        %v1339 = vadd.f32 %v1226, %v1338
        %v1340 = vpop.f32.mrb[0].mxu0
        %v1341 = vadd.f32 %v1228, %v1340
        %v1342 = vpop.f32.mrb[0].mxu0
        %v1343 = vadd.f32 %v1230, %v1342
        %1344 = vdwg.mxu0
        %v1345 = vmax.f32 %v1267, 0.0
        %v1346 = vmax.f32 %v1269, 0.0
        %v1347 = vmax.f32 %v1271, 0.0
        %v1348 = vmax.f32 %v1273, 0.0
        %v1349 = vmax.f32 %v1277, 0.0
        %v1350 = vmax.f32 %v1279, 0.0
        %v1351 = vmax.f32 %v1281, 0.0
        %v1352 = vmax.f32 %v1283, 0.0
        %v1353 = vmax.f32 %v1287, 0.0
        %v1354 = vmax.f32 %v1289, 0.0
        %v1355 = vmax.f32 %v1291, 0.0
        %v1356 = vmax.f32 %v1293, 0.0
        %v1357 = vmax.f32 %v1297, 0.0
        %v1358 = vmax.f32 %v1299, 0.0
        %v1359 = vmax.f32 %v1301, 0.0
        %v1360 = vmax.f32 %v1303, 0.0
        %v1361 = vmax.f32 %v1307, 0.0
        %v1362 = vmax.f32 %v1309, 0.0
        %v1363 = vmax.f32 %v1311, 0.0
        %v1364 = vmax.f32 %v1313, 0.0
        %v1365 = vmax.f32 %v1317, 0.0
        %v1366 = vmax.f32 %v1319, 0.0
        %v1367 = vmax.f32 %v1321, 0.0
        %v1368 = vmax.f32 %v1323, 0.0
        %v1369 = vmax.f32 %v1327, 0.0
        %v1370 = vmax.f32 %v1329, 0.0
        %v1371 = vmax.f32 %v1331, 0.0
        %v1372 = vmax.f32 %v1333, 0.0
        %v1373 = vmax.f32 %v1337, 0.0
        %v1374 = vmax.f32 %v1339, 0.0
        %v1375 = vmax.f32 %v1341, 0.0
        %v1376 = vmax.f32 %v1343, 0.0
        %v1377 = vld [vmem:[%s3] sm:$0x3]
        %v1379 = vlaneseq
        %v1380 = vshrl.u32 %v1379, 7
        %v1381 = vsub.s32 0, %v1380
        %v1382 = vrot.slane %v1377, %v1381
        %v1383 = vlaneseq
        %v1384 = vshrl.u32 %v1383, 7
        %v1385 = vsub.s32 1, %v1384
        %v1386 = vrot.slane %v1377, %v1385
        %v1389 = vmul.f32 %v1345, %v1382
        %v1390 = vmul.f32 %v1346, %v1386
        %v1391 = vmul.f32 %v1347, %v1382
        %v1392 = vmul.f32 %v1348, %v1386
        %v1393 = vmul.f32 %v1349, %v1382
        %v1394 = vmul.f32 %v1350, %v1386
        %v1395 = vmul.f32 %v1351, %v1382
        %v1396 = vmul.f32 %v1352, %v1386
        %v1397 = vmul.f32 %v1353, %v1382
        %v1398 = vmul.f32 %v1354, %v1386
        %v1399 = vmul.f32 %v1355, %v1382
        %v1400 = vmul.f32 %v1356, %v1386
        %v1401 = vmul.f32 %v1357, %v1382
        %v1402 = vmul.f32 %v1358, %v1386
        %v1403 = vmul.f32 %v1359, %v1382
        %v1404 = vmul.f32 %v1360, %v1386
        %v1405 = vmul.f32 %v1361, %v1382
        %v1406 = vmul.f32 %v1362, %v1386
        %v1407 = vmul.f32 %v1363, %v1382
        %v1408 = vmul.f32 %v1364, %v1386
        %v1409 = vmul.f32 %v1365, %v1382
        %v1410 = vmul.f32 %v1366, %v1386
        %v1411 = vmul.f32 %v1367, %v1382
        %v1412 = vmul.f32 %v1368, %v1386
        %v1413 = vmul.f32 %v1369, %v1382
        %v1414 = vmul.f32 %v1370, %v1386
        %v1415 = vmul.f32 %v1371, %v1382
        %v1416 = vmul.f32 %v1372, %v1386
        %v1417 = vmul.f32 %v1373, %v1382
        %v1418 = vmul.f32 %v1374, %v1386
        %v1419 = vmul.f32 %v1375, %v1382
        %v1420 = vmul.f32 %v1376, %v1386
        %v1421 = vadd.f32 %v1389, %v1390
        %1422 = vadd.xlane.f32.xlu0 %v1421
        %v1423 = vpop.xlane.xlu0 %1422
        %v1424 = vadd.f32 %v1391, %v1392
        %1425 = vadd.xlane.f32.xlu0 %v1424
        %v1426 = vpop.xlane.xlu0 %1425
        %v1427 = vadd.f32 %v1393, %v1394
        %1428 = vadd.xlane.f32.xlu0 %v1427
        %v1429 = vpop.xlane.xlu0 %1428
        %v1430 = vadd.f32 %v1395, %v1396
        %1431 = vadd.xlane.f32.xlu0 %v1430
        %v1432 = vpop.xlane.xlu0 %1431
        %v1433 = vadd.f32 %v1397, %v1398
        %1434 = vadd.xlane.f32.xlu0 %v1433
        %v1435 = vpop.xlane.xlu0 %1434
        %v1436 = vadd.f32 %v1399, %v1400
        %1437 = vadd.xlane.f32.xlu0 %v1436
        %v1438 = vpop.xlane.xlu0 %1437
        %v1439 = vadd.f32 %v1401, %v1402
        %1440 = vadd.xlane.f32.xlu0 %v1439
        %v1441 = vpop.xlane.xlu0 %1440
        %v1442 = vadd.f32 %v1403, %v1404
        %1443 = vadd.xlane.f32.xlu0 %v1442
        %v1444 = vpop.xlane.xlu0 %1443
        %v1445 = vadd.f32 %v1405, %v1406
        %1446 = vadd.xlane.f32.xlu0 %v1445
        %v1447 = vpop.xlane.xlu0 %1446
        %v1448 = vadd.f32 %v1407, %v1408
        %1449 = vadd.xlane.f32.xlu0 %v1448
        %v1450 = vpop.xlane.xlu0 %1449
        %v1451 = vadd.f32 %v1409, %v1410
        %1452 = vadd.xlane.f32.xlu0 %v1451
        %v1453 = vpop.xlane.xlu0 %1452
        %v1454 = vadd.f32 %v1411, %v1412
        %1455 = vadd.xlane.f32.xlu0 %v1454
        %v1456 = vpop.xlane.xlu0 %1455
        %v1457 = vadd.f32 %v1413, %v1414
        %1458 = vadd.xlane.f32.xlu0 %v1457
        %v1459 = vpop.xlane.xlu0 %1458
        %v1460 = vadd.f32 %v1415, %v1416
        %1461 = vadd.xlane.f32.xlu0 %v1460
        %v1462 = vpop.xlane.xlu0 %1461
        %v1463 = vadd.f32 %v1417, %v1418
        %1464 = vadd.xlane.f32.xlu0 %v1463
        %v1465 = vpop.xlane.xlu0 %1464
        %v1466 = vadd.f32 %v1419, %v1420
        %1467 = vadd.xlane.f32.xlu0 %v1466
        %v1468 = vpop.xlane.xlu0 %1467
        %s1469 = sld [smem:[#allocation2]]
        %v1470 = vstv %s1469
        %v1471 = vadd.f32 %v1423, %v1470
        %v1472 = vadd.f32 %v1426, %v1470
        %v1473 = vadd.f32 %v1429, %v1470
        %v1474 = vadd.f32 %v1432, %v1470
        %v1475 = vadd.f32 %v1435, %v1470
        %v1476 = vadd.f32 %v1438, %v1470
        %v1477 = vadd.f32 %v1441, %v1470
        %v1478 = vadd.f32 %v1444, %v1470
        %v1479 = vadd.f32 %v1447, %v1470
        %v1480 = vadd.f32 %v1450, %v1470
        %v1481 = vadd.f32 %v1453, %v1470
        %v1482 = vadd.f32 %v1456, %v1470
        %v1483 = vadd.f32 %v1459, %v1470
        %v1484 = vadd.f32 %v1462, %v1470
        %v1485 = vadd.f32 %v1465, %v1470
        %v1486 = vadd.f32 %v1468, %v1470
        %v1487 = vsub.f32 0.0, %v1471
        %v1488 = vsub.f32 0.0, %v1472
        %v1489 = vsub.f32 0.0, %v1473
        %v1490 = vsub.f32 0.0, %v1474
        %v1491 = vsub.f32 0.0, %v1475
        %v1492 = vsub.f32 0.0, %v1476
        %v1493 = vsub.f32 0.0, %v1477
        %v1494 = vsub.f32 0.0, %v1478
        %v1495 = vsub.f32 0.0, %v1479
        %v1496 = vsub.f32 0.0, %v1480
        %v1497 = vsub.f32 0.0, %v1481
        %v1498 = vsub.f32 0.0, %v1482
        %v1499 = vsub.f32 0.0, %v1483
        %v1500 = vsub.f32 0.0, %v1484
        %v1501 = vsub.f32 0.0, %v1485
        %v1502 = vsub.f32 0.0, %v1486
        %v1503 = vmul.f32 %v1487, 1.442695
        %v1504 = vpow.pop %v1503
        %v1505 = vmul.f32 %v1488, 1.442695
        %v1506 = vpow.pop %v1505
        %v1507 = vmul.f32 %v1489, 1.442695
        %v1508 = vpow.pop %v1507
        %v1509 = vmul.f32 %v1490, 1.442695
        %v1510 = vpow.pop %v1509
        %v1511 = vmul.f32 %v1491, 1.442695
        %v1512 = vpow.pop %v1511
        %v1513 = vmul.f32 %v1492, 1.442695
        %v1514 = vpow.pop %v1513
        %v1515 = vmul.f32 %v1493, 1.442695
        %v1516 = vpow.pop %v1515
        %v1517 = vmul.f32 %v1494, 1.442695
        %v1518 = vpow.pop %v1517
        %v1519 = vmul.f32 %v1495, 1.442695
        %v1520 = vpow.pop %v1519
        %v1521 = vmul.f32 %v1496, 1.442695
        %v1522 = vpow.pop %v1521
        %v1523 = vmul.f32 %v1497, 1.442695
        %v1524 = vpow.pop %v1523
        %v1525 = vmul.f32 %v1498, 1.442695
        %v1526 = vpow.pop %v1525
        %v1527 = vmul.f32 %v1499, 1.442695
        %v1528 = vpow.pop %v1527
        %v1529 = vmul.f32 %v1500, 1.442695
        %v1530 = vpow.pop %v1529
        %v1531 = vmul.f32 %v1501, 1.442695
        %v1532 = vpow.pop %v1531
        %v1533 = vmul.f32 %v1502, 1.442695
        %v1534 = vpow.pop %v1533
        %v1535 = vadd.f32 %v1504, 1.0
        %v1536 = vadd.f32 %v1506, 1.0
        %v1537 = vadd.f32 %v1508, 1.0
        %v1538 = vadd.f32 %v1510, 1.0
        %v1539 = vadd.f32 %v1512, 1.0
        %v1540 = vadd.f32 %v1514, 1.0
        %v1541 = vadd.f32 %v1516, 1.0
        %v1542 = vadd.f32 %v1518, 1.0
        %v1543 = vadd.f32 %v1520, 1.0
        %v1544 = vadd.f32 %v1522, 1.0
        %v1545 = vadd.f32 %v1524, 1.0
        %v1546 = vadd.f32 %v1526, 1.0
        %v1547 = vadd.f32 %v1528, 1.0
        %v1548 = vadd.f32 %v1530, 1.0
        %v1549 = vadd.f32 %v1532, 1.0
        %v1550 = vadd.f32 %v1534, 1.0
        %v1551 = vrcp.pop %v1535
        %v1552 = vrcp.pop %v1536
        %v1553 = vrcp.pop %v1537
        %v1554 = vrcp.pop %v1538
        %v1555 = vrcp.pop %v1539
        %v1556 = vrcp.pop %v1540
        %v1557 = vrcp.pop %v1541
        %v1558 = vrcp.pop %v1542
        %v1559 = vrcp.pop %v1543
        %v1560 = vrcp.pop %v1544
        %v1561 = vrcp.pop %v1545
        %v1562 = vrcp.pop %v1546
        %v1563 = vrcp.pop %v1547
        %v1564 = vrcp.pop %v1548
        %v1565 = vrcp.pop %v1549
        %v1566 = vrcp.pop %v1550
        %vm1567 = vcmask 7168
        %1568 = vst.msk [vmem:[%s262] sm:$0xff] %vm1567, %v1551
        %1569 = vst.msk [vmem:[%s262 + $0x8] sm:$0xff] %vm1567, %v1552
        %1570 = vst.msk [vmem:[%s262 + $0x10] sm:$0xff] %vm1567, %v1553
        %1571 = vst.msk [vmem:[%s262 + $0x18] sm:$0xff] %vm1567, %v1554
        %1572 = vst.msk [vmem:[%s262 + $0x20] sm:$0xff] %vm1567, %v1555
        %1573 = vst.msk [vmem:[%s262 + $0x28] sm:$0xff] %vm1567, %v1556
        %1574 = vst.msk [vmem:[%s262 + $0x30] sm:$0xff] %vm1567, %v1557
        %1575 = vst.msk [vmem:[%s262 + $0x38] sm:$0xff] %vm1567, %v1558
        %1576 = vst.msk [vmem:[%s262 + $0x40] sm:$0xff] %vm1567, %v1559
        %1577 = vst.msk [vmem:[%s262 + $0x48] sm:$0xff] %vm1567, %v1560
        %1578 = vst.msk [vmem:[%s262 + $0x50] sm:$0xff] %vm1567, %v1561
        %1579 = vst.msk [vmem:[%s262 + $0x58] sm:$0xff] %vm1567, %v1562
        %1580 = vst.msk [vmem:[%s262 + $0x60] sm:$0xff] %vm1567, %v1563
        %1581 = vst.msk [vmem:[%s262 + $0x68] sm:$0xff] %vm1567, %v1564
        %1582 = vst.msk [vmem:[%s262 + $0x70] sm:$0xff] %vm1567, %v1565
        %1583 = vst.msk [vmem:[%s262 + $0x78] sm:$0xff] %vm1567, %v1566
        %s1584 = sand.u32 %s139, 1
        %s1585 = sand.u32 %s139, 1
        %s1586 = smul.addr %s1585, 128
        %s1587 = scalar_lea.vmem [#allocation7], %s1586
        // Predicated region
        $region49: #{tpu_custom_call.1} parent=39 // pred_check
          %p1588 = pneg %p149
        $region50: #{tpu_custom_call.1} parent=39 // pred_check_branch
          %1590 = sbr.rel (%p1588) target = $region52
        $region51: #{tpu_custom_call.1} parent=39 // pred_region
          %s1591 = smul.u32 16, %s21
          %s1592 = ssub.s32 38, %s1591
          %p1593 = scmp.lt.s32.totalorder %s1592, 16
          %s1594 = scalar_select %p1593, %s1592, 16
          %s1595 = smul.u32 128, %s1594
          %p1596 = scmp.ne.s32.totalorder 0, %s1595
          %s1597 = smul.addr %s1591, 8
          %s1598 = scalar_lea.vmem %s5, %s1597
          // Predicated region
          $region53: #{tpu_custom_call.1} parent=51 // pred_check
            %p1599 = pneg %p1596
          $region54: #{tpu_custom_call.1} parent=51 // pred_check_branch
            %1601 = sbr.rel (%p1599) target = $region56
          $region55: #{tpu_custom_call.1} parent=51 // pred_region
            // Predicated region
            $region57: #{tpu_custom_call.1} parent=55 // pred_check
              _
            $region58: #{tpu_custom_call.1} parent=55 // pred_check_branch
              %1603 = sbr.rel (0) target = $region60
            $region59: #{tpu_custom_call.1} parent=55 // pred_region
              // Predicated region
              $region79: #{tpu_custom_call.1} parent=59 // pred_check
                _
              $region80: #{tpu_custom_call.1} parent=59 // pred_check_branch
                %1682 = sbr.rel (0) target = $region82
              $region81: #{tpu_custom_call.1} parent=59 // pred_region
                %s1683 = sshrl.u32 %s1594, 4
                // While loop
                $region83: #{tpu_custom_call.1} parent=81 // loop_pre_header
                  _
                $region84: #{tpu_custom_call.1} parent=81 // loop_header
                  %s1685 = sphi 0, %s1687
                  %p1686 = scmp.ge.s32.totalorder %s1685, %s1683
                  %s1690 = sphi 0, %s1727
                  %s1691 = sphi %s1587, %s1730
                  %s1692 = sphi %s1598, %s1731
                $region85: #{tpu_custom_call.1} parent=81 // loop_header_branch
                  %1689 = sbr.rel (%p1686) target = $region89
                $region86: #{tpu_custom_call.1} parent=81 // loop_body
                  %v1693 = vld [vmem:[%s1691] sm:$0xff]
                  %1694 = vst [vmem:[%s1692] sm:$0xff] %v1693
                  %v1695 = vld [vmem:[%s1691 + $0x8] sm:$0xff]
                  %1696 = vst [vmem:[%s1692 + $0x8] sm:$0xff] %v1695
                  %v1697 = vld [vmem:[%s1691 + $0x10] sm:$0xff]
                  %1698 = vst [vmem:[%s1692 + $0x10] sm:$0xff] %v1697
                  %v1699 = vld [vmem:[%s1691 + $0x18] sm:$0xff]
                  %1700 = vst [vmem:[%s1692 + $0x18] sm:$0xff] %v1699
                  %v1701 = vld [vmem:[%s1691 + $0x20] sm:$0xff]
                  %1702 = vst [vmem:[%s1692 + $0x20] sm:$0xff] %v1701
                  %v1703 = vld [vmem:[%s1691 + $0x28] sm:$0xff]
                  %1704 = vst [vmem:[%s1692 + $0x28] sm:$0xff] %v1703
                  %v1705 = vld [vmem:[%s1691 + $0x30] sm:$0xff]
                  %1706 = vst [vmem:[%s1692 + $0x30] sm:$0xff] %v1705
                  %v1707 = vld [vmem:[%s1691 + $0x38] sm:$0xff]
                  %1708 = vst [vmem:[%s1692 + $0x38] sm:$0xff] %v1707
                  %v1709 = vld [vmem:[%s1691 + $0x40] sm:$0xff]
                  %1710 = vst [vmem:[%s1692 + $0x40] sm:$0xff] %v1709
                  %v1711 = vld [vmem:[%s1691 + $0x48] sm:$0xff]
                  %1712 = vst [vmem:[%s1692 + $0x48] sm:$0xff] %v1711
                  %v1713 = vld [vmem:[%s1691 + $0x50] sm:$0xff]
                  %1714 = vst [vmem:[%s1692 + $0x50] sm:$0xff] %v1713
                  %v1715 = vld [vmem:[%s1691 + $0x58] sm:$0xff]
                  %1716 = vst [vmem:[%s1692 + $0x58] sm:$0xff] %v1715
                  %v1717 = vld [vmem:[%s1691 + $0x60] sm:$0xff]
                  %1718 = vst [vmem:[%s1692 + $0x60] sm:$0xff] %v1717
                  %v1719 = vld [vmem:[%s1691 + $0x68] sm:$0xff]
                  %1720 = vst [vmem:[%s1692 + $0x68] sm:$0xff] %v1719
                  %v1721 = vld [vmem:[%s1691 + $0x70] sm:$0xff]
                  %1722 = vst [vmem:[%s1692 + $0x70] sm:$0xff] %v1721
                  %v1723 = vld [vmem:[%s1691 + $0x78] sm:$0xff]
                  %1724 = vst [vmem:[%s1692 + $0x78] sm:$0xff] %v1723
                  %s1725 = sadd.s32 1, %s1690
                  %p1726 = scmp.ge.s32.totalorder %s1725, %s1683
                  %s1727 = scalar_select %p1726, 0, %s1725
                  %s1728 = smul.u32 %s1727, 128
                  %s1729 = smul.u32 %s1727, 128
                  %s1730 = scalar_lea.vmem %s1587, %s1728 [#allocation7]
                  %s1731 = scalar_lea.vmem %s1598, %s1729
                $region87: #{tpu_custom_call.1} parent=81 // loop_footer
                  %s1687 = sadd.s32 %s1685, 1
                $region88: #{tpu_custom_call.1} parent=81 // loop_footer_branch
                  %1684 = sbr.rel target = $region84
                $region89: #{tpu_custom_call.1} parent=81 // loop_exit
                  _
                %s1732 = sshrl.u32 %s1594, 4
                %s1733 = sand.u32 %s1594, 15
                %s1734 = smul.u32 %s1732, 16
                %s1735 = smul.u32 8, %s1734
                %s1736 = scalar_lea.vmem %s1587, %s1735 [#allocation7]
                %s1737 = smul.u32 8, %s1734
                %s1738 = scalar_lea.vmem %s1598, %s1737
                // While loop
                $region90: #{tpu_custom_call.1} parent=81 // loop_pre_header
                  _
                $region91: #{tpu_custom_call.1} parent=81 // loop_header
                  %s1740 = sphi 0, %s1742
                  %p1741 = scmp.ge.s32.totalorder %s1740, %s1733
                  %s1745 = sphi 0, %s1752
                  %s1746 = sphi %s1736, %s1755
                  %s1747 = sphi %s1738, %s1756
                $region92: #{tpu_custom_call.1} parent=81 // loop_header_branch
                  %1744 = sbr.rel (%p1741) target = $region96
                $region93: #{tpu_custom_call.1} parent=81 // loop_body
                  %v1748 = vld [vmem:[%s1746] sm:$0xff]
                  %1749 = vst [vmem:[%s1747] sm:$0xff] %v1748
                  %s1750 = sadd.s32 1, %s1745
                  %p1751 = scmp.ge.s32.totalorder %s1750, %s1733
                  %s1752 = scalar_select %p1751, 0, %s1750
                  %s1753 = smul.u32 %s1752, 8
                  %s1754 = smul.u32 %s1752, 8
                  %s1755 = scalar_lea.vmem %s1736, %s1753 [#allocation7]
                  %s1756 = scalar_lea.vmem %s1738, %s1754
                $region94: #{tpu_custom_call.1} parent=81 // loop_footer
                  %s1742 = sadd.s32 %s1740, 1
                $region95: #{tpu_custom_call.1} parent=81 // loop_footer_branch
                  %1739 = sbr.rel target = $region91
                $region96: #{tpu_custom_call.1} parent=81 // loop_exit
                  _
              $region82: #{tpu_custom_call.1} parent=59 // pred_fallthru
                _
              // Predicated region
              $region97: #{tpu_custom_call.1} parent=59 // pred_check
                _
              $region98: #{tpu_custom_call.1} parent=59 // pred_check_branch
                %1758 = sbr.rel target = $region100
              $region99: #{tpu_custom_call.1} parent=59 // pred_region
                _
              $region100: #{tpu_custom_call.1} parent=59 // pred_fallthru
                _
            $region60: #{tpu_custom_call.1} parent=55 // pred_fallthru
              _
            // Predicated region
            $region61: #{tpu_custom_call.1} parent=55 // pred_check
              _
            $region62: #{tpu_custom_call.1} parent=55 // pred_check_branch
              %1605 = sbr.rel target = $region64
            $region63: #{tpu_custom_call.1} parent=55 // pred_region
              %s1607 = sshrl.u32 %s1594, 4
              // While loop
              $region65: #{tpu_custom_call.1} parent=63 // loop_pre_header
                _
              $region66: #{tpu_custom_call.1} parent=63 // loop_header
                %s1609 = sphi 0, %s1611
                %p1610 = scmp.ge.s32.totalorder %s1609, %s1607
                %s1614 = sphi 0, %s1651
                %s1615 = sphi %s1587, %s1654
                %s1616 = sphi %s1598, %s1655
              $region67: #{tpu_custom_call.1} parent=63 // loop_header_branch
                %1613 = sbr.rel (%p1610) target = $region71
              $region68: #{tpu_custom_call.1} parent=63 // loop_body
                %v1617 = vld [vmem:[%s1615] sm:$0xff]
                %1618 = vst [vmem:[%s1616] sm:$0xff] %v1617
                %v1619 = vld [vmem:[%s1615 + $0x8] sm:$0xff]
                %1620 = vst [vmem:[%s1616 + $0x8] sm:$0xff] %v1619
                %v1621 = vld [vmem:[%s1615 + $0x10] sm:$0xff]
                %1622 = vst [vmem:[%s1616 + $0x10] sm:$0xff] %v1621
                %v1623 = vld [vmem:[%s1615 + $0x18] sm:$0xff]
                %1624 = vst [vmem:[%s1616 + $0x18] sm:$0xff] %v1623
                %v1625 = vld [vmem:[%s1615 + $0x20] sm:$0xff]
                %1626 = vst [vmem:[%s1616 + $0x20] sm:$0xff] %v1625
                %v1627 = vld [vmem:[%s1615 + $0x28] sm:$0xff]
                %1628 = vst [vmem:[%s1616 + $0x28] sm:$0xff] %v1627
                %v1629 = vld [vmem:[%s1615 + $0x30] sm:$0xff]
                %1630 = vst [vmem:[%s1616 + $0x30] sm:$0xff] %v1629
                %v1631 = vld [vmem:[%s1615 + $0x38] sm:$0xff]
                %1632 = vst [vmem:[%s1616 + $0x38] sm:$0xff] %v1631
                %v1633 = vld [vmem:[%s1615 + $0x40] sm:$0xff]
                %1634 = vst [vmem:[%s1616 + $0x40] sm:$0xff] %v1633
                %v1635 = vld [vmem:[%s1615 + $0x48] sm:$0xff]
                %1636 = vst [vmem:[%s1616 + $0x48] sm:$0xff] %v1635
                %v1637 = vld [vmem:[%s1615 + $0x50] sm:$0xff]
                %1638 = vst [vmem:[%s1616 + $0x50] sm:$0xff] %v1637
                %v1639 = vld [vmem:[%s1615 + $0x58] sm:$0xff]
                %1640 = vst [vmem:[%s1616 + $0x58] sm:$0xff] %v1639
                %v1641 = vld [vmem:[%s1615 + $0x60] sm:$0xff]
                %1642 = vst [vmem:[%s1616 + $0x60] sm:$0xff] %v1641
                %v1643 = vld [vmem:[%s1615 + $0x68] sm:$0xff]
                %1644 = vst [vmem:[%s1616 + $0x68] sm:$0xff] %v1643
                %v1645 = vld [vmem:[%s1615 + $0x70] sm:$0xff]
                %1646 = vst [vmem:[%s1616 + $0x70] sm:$0xff] %v1645
                %v1647 = vld [vmem:[%s1615 + $0x78] sm:$0xff]
                %1648 = vst [vmem:[%s1616 + $0x78] sm:$0xff] %v1647
                %s1649 = sadd.s32 1, %s1614
                %p1650 = scmp.ge.s32.totalorder %s1649, %s1607
                %s1651 = scalar_select %p1650, 0, %s1649
                %s1652 = smul.u32 %s1651, 128
                %s1653 = smul.u32 %s1651, 128
                %s1654 = scalar_lea.vmem %s1587, %s1652 [#allocation7]
                %s1655 = scalar_lea.vmem %s1598, %s1653
              $region69: #{tpu_custom_call.1} parent=63 // loop_footer
                %s1611 = sadd.s32 %s1609, 1
              $region70: #{tpu_custom_call.1} parent=63 // loop_footer_branch
                %1608 = sbr.rel target = $region66
              $region71: #{tpu_custom_call.1} parent=63 // loop_exit
                _
              %s1656 = sshrl.u32 %s1594, 4
              %s1657 = sand.u32 %s1594, 15
              %s1658 = smul.u32 %s1656, 16
              %s1659 = smul.u32 8, %s1658
              %s1660 = scalar_lea.vmem %s1587, %s1659 [#allocation7]
              %s1661 = smul.u32 8, %s1658
              %s1662 = scalar_lea.vmem %s1598, %s1661
              // While loop
              $region72: #{tpu_custom_call.1} parent=63 // loop_pre_header
                _
              $region73: #{tpu_custom_call.1} parent=63 // loop_header
                %s1664 = sphi 0, %s1666
                %p1665 = scmp.ge.s32.totalorder %s1664, %s1657
                %s1669 = sphi 0, %s1676
                %s1670 = sphi %s1660, %s1679
                %s1671 = sphi %s1662, %s1680
              $region74: #{tpu_custom_call.1} parent=63 // loop_header_branch
                %1668 = sbr.rel (%p1665) target = $region78
              $region75: #{tpu_custom_call.1} parent=63 // loop_body
                %v1672 = vld [vmem:[%s1670] sm:$0xff]
                %1673 = vst [vmem:[%s1671] sm:$0xff] %v1672
                %s1674 = sadd.s32 1, %s1669
                %p1675 = scmp.ge.s32.totalorder %s1674, %s1657
                %s1676 = scalar_select %p1675, 0, %s1674
                %s1677 = smul.u32 %s1676, 8
                %s1678 = smul.u32 %s1676, 8
                %s1679 = scalar_lea.vmem %s1660, %s1677 [#allocation7]
                %s1680 = scalar_lea.vmem %s1662, %s1678
              $region76: #{tpu_custom_call.1} parent=63 // loop_footer
                %s1666 = sadd.s32 %s1664, 1
              $region77: #{tpu_custom_call.1} parent=63 // loop_footer_branch
                %1663 = sbr.rel target = $region73
              $region78: #{tpu_custom_call.1} parent=63 // loop_exit
                _
            $region64: #{tpu_custom_call.1} parent=55 // pred_fallthru
              _
          $region56: #{tpu_custom_call.1} parent=51 // pred_fallthru
            _
          %1759 = vnop
        $region52: #{tpu_custom_call.1} parent=39 // pred_fallthru
          _
      $region40: #{tpu_custom_call.1} parent=5 // pred_fallthru
        _
      %p1760 = scmp.le.s32.totalorder 2, %s16
      // Predicated region
      $region101: #{tpu_custom_call.1} parent=5 // pred_check
        %p1761 = pneg %p1760
      $region102: #{tpu_custom_call.1} parent=5 // pred_check_branch
        %1763 = sbr.rel (%p1761) target = $region104
      $region103: #{tpu_custom_call.1} parent=5 // pred_region
        %s1764 = ssub.s32 %s16, 2
        // Predicated region
        $region105: #{tpu_custom_call.1} parent=103 // pred_check
          %p1765 = pneg %p155
        $region106: #{tpu_custom_call.1} parent=103 // pred_check_branch
          %1767 = sbr.rel (%p1765) target = $region108
        $region107: #{tpu_custom_call.1} parent=103 // pred_region
          %s1768 = sand.u32 %s140, 1
          %s1769 = sand.u32 %s140, 1
          %s1770 = smul.addr %s1769, 128
          %s1771 = scalar_lea.vmem [#allocation7], %s1770
        $region108: #{tpu_custom_call.1} parent=103 // pred_fallthru
          _
      $region104: #{tpu_custom_call.1} parent=5 // pred_fallthru
        _
    $region6: #{tpu_custom_call.1} parent=1 // loop_footer
      %s20 = sadd.s32 1, %s16
    $region7: #{tpu_custom_call.1} parent=1 // loop_footer_branch
      %15 = sbr.rel target = $region3
    $region8: #{tpu_custom_call.1} parent=1 // loop_exit
      _
    %1772 = vsyncpa [#allocation4], 1
    %s1773 = scalar_lea.sflag [#allocation4], 1
    %1774 = vsyncpa %s1773, 1
    %1775 = vsyncpa [#allocation6], 1

</llo_original>
